<compile_context>
chip_gen: v6e
topology: v6e:2x2x1
jax: 0.10.0
libtpu: 0.0.40
codegen_flags: <defaults>
</compile_context>

<pallas_src>
import functools

import jax
import jax.numpy as jnp
from jax import lax
from jax.experimental import pallas as pl
from jax.experimental.pallas import tpu as pltpu


def _round_up(x, m):
    return ((x + m - 1) // m) * m


def _gcn_fused_kernel(x_ref, w1_ref, b1_ref, wh_ref, bh_ref, w2_ref, b2_ref,
                      o_ref, *, n_layers, compute_dtype):
    # x_ref:  (tm, Kp)   w1_ref: (Kp, Hp)   b1_ref: (1, Hp)
    # wh_ref: (Hp, Hp)   bh_ref: (1, Hp)
    # w2_ref: (Hp, Cp)   b2_ref: (1, Cp)    o_ref:  (tm, Cp)
    # All matmuls run on the MXU with f32 accumulation; bias + ReLU in f32.

    # fc1 + relu
    h = jnp.dot(x_ref[...], w1_ref[...], preferred_element_type=jnp.float32)
    h = jnp.maximum(h + b1_ref[...], 0.0)

    # N repeats of the SAME hidden layer; weights stay resident in VMEM.
    if n_layers > 0:
        wh = wh_ref[...]
        # Hoist the bias broadcast out of the loop (JAX doesn't CSE it).
        bh = jnp.broadcast_to(bh_ref[...], h.shape)

        def body(_, h_cur):
            acc = jnp.dot(h_cur.astype(compute_dtype), wh,
                          preferred_element_type=jnp.float32)
            return jnp.maximum(acc + bh, 0.0)

        h = lax.fori_loop(0, n_layers, body, h, unroll=True)

    # fc2 + relu (the module applies ReLU at the end too)
    out = jnp.dot(h.astype(compute_dtype), w2_ref[...],
                  preferred_element_type=jnp.float32)
    o_ref[...] = jnp.maximum(out + b2_ref[...], 0.0)


@functools.partial(jax.jit, static_argnames=("n_layers", "use_bf16", "tm_max"))
def gcn_n_layer_forward(x, params, *, n_layers, use_bf16=True, tm_max=256):
    """Fused GCN_N_layer forward. Returns (num_nodes, class_number) f32."""
    m, f_in = x.shape
    hidden = params["w1"].shape[1]
    n_cls = params["w2"].shape[1]

    cdt = jnp.bfloat16 if use_bf16 else jnp.float32

    # Lane-pad feature dims to 128; sublane/tile-pad the row (node) dim.
    kp = _round_up(f_in, 128)
    hp = _round_up(hidden, 128)
    cp = _round_up(n_cls, 128)
    m8 = _round_up(m, 8)
    tm = min(m8, tm_max)
    mp = _round_up(m8, tm)

    def pad_mat(w, rows, cols, dt):
        return jnp.zeros((rows, cols), dt).at[:w.shape[0], :w.shape[1]].set(
            w.astype(dt))

    def pad_bias(b, cols):
        # biases stay f32 (added after the f32-accumulated matmul)
        return jnp.zeros((1, cols), jnp.float32).at[0, :b.shape[0]].set(
            b.astype(jnp.float32))

    xf = x.astype(jnp.float32)                       # x = x.float()
    x_p = pad_mat(xf, mp, kp, cdt)
    w1 = pad_mat(params["w1"], kp, hp, cdt)
    wh = pad_mat(params["wh"], hp, hp, cdt)
    w2 = pad_mat(params["w2"], hp, cp, cdt)
    b1 = pad_bias(params["b1"], hp)
    bh = pad_bias(params["bh"], hp)
    b2 = pad_bias(params["b2"], cp)

    kern = functools.partial(_gcn_fused_kernel, n_layers=n_layers,
                             compute_dtype=cdt)

    out_p = pl.pallas_call(
        kern,
        out_shape=jax.ShapeDtypeStruct((mp, cp), jnp.float32),
        grid_spec=pltpu.PrefetchScalarGridSpec(
            num_scalar_prefetch=0,
            grid=(mp // tm,),
            in_specs=[
                pl.BlockSpec((tm, kp), lambda i: (i, 0)),   # x row tile
                pl.BlockSpec((kp, hp), lambda i: (0, 0)),   # w1 (VMEM-resident)
                pl.BlockSpec((1, hp), lambda i: (0, 0)),    # b1
                pl.BlockSpec((hp, hp), lambda i: (0, 0)),   # wh (shared, resident)
                pl.BlockSpec((1, hp), lambda i: (0, 0)),    # bh
                pl.BlockSpec((hp, cp), lambda i: (0, 0)),   # w2 (VMEM-resident)
                pl.BlockSpec((1, cp), lambda i: (0, 0)),    # b2
            ],
            out_specs=pl.BlockSpec((tm, cp), lambda i: (i, 0)),
        ),
        compiler_params=pltpu.CompilerParams(
            dimension_semantics=("parallel",)),
    )(x_p, w1, b1, wh, bh, w2, b2)

    # Strip row/lane padding (padded lanes carry zeros / padded rows are junk).
    return out_p[:m, :n_cls]


def init_params(key, f_in, hidden, class_number):
    """Deterministic synthetic parameters (shapes match the nn.Module)."""
    ks = jax.random.split(key, 6)
    scale = lambda fan_in: 1.0 / jnp.sqrt(jnp.float32(fan_in))
    return {
        # fc1: Linear(F -> hidden)
        "w1": jax.random.normal(ks[0], (f_in, hidden), jnp.float32) * scale(f_in),
        "b1": jax.random.normal(ks[1], (hidden,), jnp.float32) * scale(f_in),
        # hidden: Linear(hidden -> hidden), shared across the N repeats
        "wh": jax.random.normal(ks[2], (hidden, hidden), jnp.float32) * scale(hidden),
        "bh": jax.random.normal(ks[3], (hidden,), jnp.float32) * scale(hidden),
        # fc2: Linear(hidden -> class_number)
        "w2": jax.random.normal(ks[4], (hidden, class_number), jnp.float32) * scale(hidden),
        "b2": jax.random.normal(ks[5], (class_number,), jnp.float32) * scale(hidden),
    }


def _reference_forward(x, params, n_layers, compute_dtype=jnp.float32):
    """Pure-JAX reference (optionally with bf16 matmul inputs, f32 accumulate)."""
    x = x.astype(jnp.float32)

    def lin_relu(h, w, b):
        acc = jnp.dot(h.astype(compute_dtype), w.astype(compute_dtype),
                      preferred_element_type=jnp.float32)
        return jnp.maximum(acc + b.astype(jnp.float32), 0.0)

    x = lin_relu(x, params["w1"], params["b1"])
    for _ in range(n_layers):
        x = lin_relu(x, params["wh"], params["bh"])
    x = lin_relu(x, params["w2"], params["b2"])
    return x


if __name__ == "__main__":
    # Small shapes consistent with the module's forward:
    #   x: (num_nodes, F), F -> hidden -> ... (N times) ... -> class_number
    num_nodes = 512      # enough rows for a 2-step "parallel" row grid (tm=256)
    f_in = 96
    hidden = 32
    class_number = 7
    n_layers = 2         # the module's N (extra shared hidden layers)

    key = jax.random.PRNGKey(0)
    kx, kp = jax.random.split(key)
    x = jax.random.normal(kx, (num_nodes, f_in), jnp.float32)
    params = init_params(kp, f_in, hidden, class_number)

    # f32 path: exact semantics of the PyTorch module.
    out_f32 = jax.block_until_ready(
        gcn_n_layer_forward(x, params, n_layers=n_layers, use_bf16=False))
    ref_f32 = _reference_forward(x, params, n_layers, jnp.float32)
    assert out_f32.shape == (num_nodes, class_number)
    assert jnp.allclose(out_f32, ref_f32, atol=1e-4, rtol=1e-4)

    # bf16-MXU path (f32 accumulation / bias / ReLU) for v6e/v7x throughput.
    out_bf16 = jax.block_until_ready(
        gcn_n_layer_forward(x, params, n_layers=n_layers, use_bf16=True))
    ref_bf16 = _reference_forward(x, params, n_layers, jnp.bfloat16)
    assert out_bf16.shape == (num_nodes, class_number)
    assert jnp.allclose(out_bf16, ref_bf16, atol=2e-3, rtol=2e-3)
    assert jnp.allclose(out_bf16, ref_f32, atol=1e-1, rtol=1e-1)

    print("KERNEL_OK")
</pallas_src>

<mosaic_0001>
module attributes {stable_mosaic.version = 11 : i64} {
  func.func @_gcn_fused_kernel(%arg0: i32, %arg1: memref<256x128xf32, #tpu.memory_space<vmem>>, %arg2: memref<128x128xf32, #tpu.memory_space<vmem>>, %arg3: memref<1x128xf32, #tpu.memory_space<vmem>>, %arg4: memref<128x128xf32, #tpu.memory_space<vmem>>, %arg5: memref<1x128xf32, #tpu.memory_space<vmem>>, %arg6: memref<128x128xf32, #tpu.memory_space<vmem>>, %arg7: memref<1x128xf32, #tpu.memory_space<vmem>>, %arg8: memref<256x128xf32, #tpu.memory_space<vmem>>) attributes {dimension_semantics = [#tpu.dimension_semantics<parallel>], iteration_bounds = array<i64: 2>, scalar_prefetch = 0 : i64, scratch_operands = 0 : i64, tpu.core_type = #tpu.core_type<tc>, window_params = [{transform_indices = @transform_0, window_bounds = array<i64: 256, 128>}, {pipeline_mode = #tpu.pipeline_mode<synchronous>, transform_indices = @transform_1, window_bounds = array<i64: 128, 128>}, {pipeline_mode = #tpu.pipeline_mode<synchronous>, transform_indices = @transform_2, window_bounds = array<i64: 1, 128>}, {pipeline_mode = #tpu.pipeline_mode<synchronous>, transform_indices = @transform_3, window_bounds = array<i64: 128, 128>}, {pipeline_mode = #tpu.pipeline_mode<synchronous>, transform_indices = @transform_4, window_bounds = array<i64: 1, 128>}, {pipeline_mode = #tpu.pipeline_mode<synchronous>, transform_indices = @transform_5, window_bounds = array<i64: 128, 128>}, {pipeline_mode = #tpu.pipeline_mode<synchronous>, transform_indices = @transform_6, window_bounds = array<i64: 1, 128>}, {transform_indices = @transform_7, window_bounds = array<i64: 256, 128>}]} {
    %c0 = arith.constant 0 : index
    %c0_0 = arith.constant 0 : index
    %0 = vector.load %arg1[%c0, %c0_0] : memref<256x128xf32, #tpu.memory_space<vmem>>, vector<256x128xf32>
    %c0_1 = arith.constant 0 : index
    %c0_2 = arith.constant 0 : index
    %1 = vector.load %arg2[%c0_1, %c0_2] : memref<128x128xf32, #tpu.memory_space<vmem>>, vector<128x128xf32>
    %cst = arith.constant dense<0.000000e+00> : vector<256x128xf32>
    %2 = tpu.matmul %0, %1, %cst {dimension_numbers = #tpu.dot_dimension_numbers<[1], [0], [0], [1], [0, 0, 1, 1], [], []>} : vector<256x128xf32>, vector<128x128xf32>, vector<256x128xf32> -> vector<256x128xf32>
    %c0_3 = arith.constant 0 : index
    %c0_4 = arith.constant 0 : index
    %3 = vector.load %arg3[%c0_3, %c0_4] : memref<1x128xf32, #tpu.memory_space<vmem>>, vector<1x128xf32>
    %4 = vector.broadcast %3 : vector<1x128xf32> to vector<256x128xf32>
    %5 = arith.addf %2, %4 : vector<256x128xf32>
    %cst_5 = arith.constant 0.000000e+00 : f32
    %6 = vector.broadcast %cst_5 : f32 to vector<256x128xf32>
    %7 = arith.maximumf %5, %6 : vector<256x128xf32>
    %c0_6 = arith.constant 0 : index
    %c0_7 = arith.constant 0 : index
    %8 = vector.load %arg4[%c0_6, %c0_7] : memref<128x128xf32, #tpu.memory_space<vmem>>, vector<128x128xf32>
    %c0_8 = arith.constant 0 : index
    %c0_9 = arith.constant 0 : index
    %9 = vector.load %arg5[%c0_8, %c0_9] : memref<1x128xf32, #tpu.memory_space<vmem>>, vector<1x128xf32>
    %10 = vector.shape_cast %9 : vector<1x128xf32> to vector<1x128xf32>
    %11 = vector.broadcast %10 : vector<1x128xf32> to vector<256x128xf32>
    %c0_i32 = arith.constant 0 : i32
    %cst_10 = arith.constant dense<0.000000e+00> : vector<256x128xf32>
    %12 = tpu.matmul %7, %8, %cst_10 {dimension_numbers = #tpu.dot_dimension_numbers<[1], [0], [0], [1], [0, 0, 1, 1], [], []>} : vector<256x128xf32>, vector<128x128xf32>, vector<256x128xf32> -> vector<256x128xf32>
    %13 = arith.addf %12, %11 : vector<256x128xf32>
    %cst_11 = arith.constant 0.000000e+00 : f32
    %14 = vector.broadcast %cst_11 : f32 to vector<256x128xf32>
    %15 = arith.maximumf %13, %14 : vector<256x128xf32>
    %c1_i32 = arith.constant 1 : i32
    %cst_12 = arith.constant dense<0.000000e+00> : vector<256x128xf32>
    %16 = tpu.matmul %15, %8, %cst_12 {dimension_numbers = #tpu.dot_dimension_numbers<[1], [0], [0], [1], [0, 0, 1, 1], [], []>} : vector<256x128xf32>, vector<128x128xf32>, vector<256x128xf32> -> vector<256x128xf32>
    %17 = arith.addf %16, %11 : vector<256x128xf32>
    %cst_13 = arith.constant 0.000000e+00 : f32
    %18 = vector.broadcast %cst_13 : f32 to vector<256x128xf32>
    %19 = arith.maximumf %17, %18 : vector<256x128xf32>
    %c0_14 = arith.constant 0 : index
    %c0_15 = arith.constant 0 : index
    %20 = vector.load %arg6[%c0_14, %c0_15] : memref<128x128xf32, #tpu.memory_space<vmem>>, vector<128x128xf32>
    %cst_16 = arith.constant dense<0.000000e+00> : vector<256x128xf32>
    %21 = tpu.matmul %19, %20, %cst_16 {dimension_numbers = #tpu.dot_dimension_numbers<[1], [0], [0], [1], [0, 0, 1, 1], [], []>} : vector<256x128xf32>, vector<128x128xf32>, vector<256x128xf32> -> vector<256x128xf32>
    %c0_17 = arith.constant 0 : index
    %c0_18 = arith.constant 0 : index
    %22 = vector.load %arg7[%c0_17, %c0_18] : memref<1x128xf32, #tpu.memory_space<vmem>>, vector<1x128xf32>
    %23 = vector.broadcast %22 : vector<1x128xf32> to vector<256x128xf32>
    %24 = arith.addf %21, %23 : vector<256x128xf32>
    %cst_19 = arith.constant 0.000000e+00 : f32
    %25 = vector.broadcast %cst_19 : f32 to vector<256x128xf32>
    %26 = arith.maximumf %24, %25 : vector<256x128xf32>
    %c0_20 = arith.constant 0 : index
    %c0_21 = arith.constant 0 : index
    %27 = vector.load %arg8[%c0_20, %c0_21] : memref<256x128xf32, #tpu.memory_space<vmem>>, vector<256x128xf32>
    tpu.vector_store %arg8[%c0_20, %c0_21], %26 {strides = array<i32>} : memref<256x128xf32, #tpu.memory_space<vmem>>, vector<256x128xf32>,
    return
  }
  func.func @transform_0(%arg0: i32) -> (i32, i32) {
    %c0_i32 = arith.constant 0 : i32
    %c0_i32_0 = arith.constant 0 : i32
    return %arg0, %c0_i32 : i32, i32
  }
  func.func @transform_1(%arg0: i32) -> (i32, i32) {
    %c0_i32 = arith.constant 0 : i32
    %c0_i32_0 = arith.constant 0 : i32
    %c0_i32_1 = arith.constant 0 : i32
    return %c0_i32, %c0_i32_0 : i32, i32
  }
  func.func @transform_2(%arg0: i32) -> (i32, i32) {
    %c0_i32 = arith.constant 0 : i32
    %c0_i32_0 = arith.constant 0 : i32
    %c0_i32_1 = arith.constant 0 : i32
    return %c0_i32, %c0_i32_0 : i32, i32
  }
  func.func @transform_3(%arg0: i32) -> (i32, i32) {
    %c0_i32 = arith.constant 0 : i32
    %c0_i32_0 = arith.constant 0 : i32
    %c0_i32_1 = arith.constant 0 : i32
    return %c0_i32, %c0_i32_0 : i32, i32
  }
  func.func @transform_4(%arg0: i32) -> (i32, i32) {
    %c0_i32 = arith.constant 0 : i32
    %c0_i32_0 = arith.constant 0 : i32
    %c0_i32_1 = arith.constant 0 : i32
    return %c0_i32, %c0_i32_0 : i32, i32
  }
  func.func @transform_5(%arg0: i32) -> (i32, i32) {
    %c0_i32 = arith.constant 0 : i32
    %c0_i32_0 = arith.constant 0 : i32
    %c0_i32_1 = arith.constant 0 : i32
    return %c0_i32, %c0_i32_0 : i32, i32
  }
  func.func @transform_6(%arg0: i32) -> (i32, i32) {
    %c0_i32 = arith.constant 0 : i32
    %c0_i32_0 = arith.constant 0 : i32
    %c0_i32_1 = arith.constant 0 : i32
    return %c0_i32, %c0_i32_0 : i32, i32
  }
  func.func @transform_7(%arg0: i32) -> (i32, i32) {
    %c0_i32 = arith.constant 0 : i32
    %c0_i32_0 = arith.constant 0 : i32
    return %arg0, %c0_i32 : i32, i32
  }
}

</mosaic_0001>

<llo_original>
// kernel: gcn_n_layer_forward.1
$region0: #{gcn_n_layer_forward.1}
  #allocation0 [shape = 'u32[]', space=smem, size = 0x4, offset = 0x4, fixed_abs, tag = 'smem constant byte address 0x4 - core index']
  #allocation1 [shape = 'u32[144,128]{1,0:T(1,128)}', space=vmem, size = 0x12000, scoped, tag = 'internal scratch']
  %s0 = inlined_call_operand.vmem [shape: f32[512,128], index: 0, kind: input, shape index: {}]
  %s1 = inlined_call_operand.vmem [shape: f32[128,128], index: 1, kind: input, shape index: {}]
  %s2 = inlined_call_operand.vmem [shape: f32[1,128], index: 2, kind: input, shape index: {}]
  %s3 = inlined_call_operand.vmem [shape: f32[128,128], index: 3, kind: input, shape index: {}]
  %s4 = inlined_call_operand.vmem [shape: f32[1,128], index: 4, kind: input, shape index: {}]
  %s5 = inlined_call_operand.vmem [shape: f32[128,128], index: 5, kind: input, shape index: {}]
  %s6 = inlined_call_operand.vmem [shape: f32[1,128], index: 6, kind: input, shape index: {}]
  %s7 = inlined_call_operand.vmem [shape: f32[512,128], index: 7, kind: output, shape index: {}]
  %s8 = sld [smem:[#allocation0]]
  $region61: #{gcn_n_layer_forward.1} parent=0
    _
  %s10 = ssub.s32 1, %s8
  %s11 = scalar_select 0, %s10, %s8
  loop: start=0, step=1, limit=4
  $region2: #{gcn_n_layer_forward.1} parent=0 // loop_pre_header
    _
  $region3: #{gcn_n_layer_forward.1} parent=0 // loop_header
    %s13 = sphi 0, %s17
    %p14 = scmp.ge.s32.totalorder %s13, 4
    %s23 = sphi 0, %s25
    %s26 = sphi 0, %s23
    %s27 = sphi 0, %s26
    %s43 = sphi 0, %s27
    %s47 = sphi 0, %s47
    %s49 = sphi 0, %s47
    %s50 = sphi 0, %s49
    %s64 = sphi 0, %s50
    %s68 = sphi 0, %s68
    %s70 = sphi 0, %s68
    %s71 = sphi 0, %s70
    %s85 = sphi 0, %s71
    %s89 = sphi 0, %s89
    %s91 = sphi 0, %s89
    %s92 = sphi 0, %s91
    %s106 = sphi 0, %s92
    %s110 = sphi 0, %s110
    %s112 = sphi 0, %s110
    %s113 = sphi 0, %s112
    %s127 = sphi 0, %s113
    %s131 = sphi 0, %s131
    %s133 = sphi 0, %s131
    %s134 = sphi 0, %s133
    %s148 = sphi 0, %s134
    %s152 = sphi 0, %s152
    %s154 = sphi 0, %s152
    %s155 = sphi 0, %s154
    %s169 = sphi 0, %s155
    %s175 = sphi 0, %s177
    %s178 = sphi 0, %s175
    %s179 = sphi 0, %s178
    %s195 = sphi 0, %s179
  $region4: #{gcn_n_layer_forward.1} parent=0 // loop_header_branch
    %16 = sbr.rel (%p14) target = $region8
  $region5: #{gcn_n_layer_forward.1} parent=0 // loop_body
    %s18 = ssub.s32 %s13, 1
    %s19 = ssub.s32 %s13, 2
    %s20 = sadd.s32 %s13, 1
    %s21 = ssub.s32 %s13, %s20
    %p22 = scmp.eq.s32.totalorder %s21, 0
    %s24 = sadd.s32 %s23, 1
    %s25 = scalar_select %p22, %s23, %s24
    %p28 = pneg %p22
    %p29 = scmp.eq.s32.totalorder %s13, 1
    %p30 = por %p28, %p29
    %p31 = scmp.ne.s32.totalorder %s23, %s26
    %p32 = scmp.eq.s32.totalorder %s13, 0
    %p33 = por %p31, %p32
    %p34 = scmp.ne.s32.totalorder %s23, %s26
    %p35 = scmp.eq.s32.totalorder %s18, 1
    %p36 = por %p34, %p35
    %p37 = scmp.ne.s32.totalorder %s26, %s27
    %p38 = scmp.eq.s32.totalorder %s18, 0
    %p39 = por %p37, %p38
    %p40 = scmp.ne.s32.totalorder %s26, %s27
    %p41 = scmp.eq.s32.totalorder %s19, 1
    %p42 = por %p40, %p41
    %p44 = scmp.ne.s32.totalorder %s27, %s43
    %p45 = scmp.eq.s32.totalorder %s19, 0
    %p46 = por %p44, %p45
    %s48 = sadd.s32 %s47, 1
    %p51 = scmp.eq.s32.totalorder %s13, 1
    %p52 = scmp.ne.s32.totalorder %s47, %s49
    %p53 = scmp.eq.s32.totalorder %s13, 0
    %p54 = por %p52, %p53
    %p55 = scmp.ne.s32.totalorder %s47, %s49
    %p56 = scmp.eq.s32.totalorder %s18, 1
    %p57 = por %p55, %p56
    %p58 = scmp.ne.s32.totalorder %s49, %s50
    %p59 = scmp.eq.s32.totalorder %s18, 0
    %p60 = por %p58, %p59
    %p61 = scmp.ne.s32.totalorder %s49, %s50
    %p62 = scmp.eq.s32.totalorder %s19, 1
    %p63 = por %p61, %p62
    %p65 = scmp.ne.s32.totalorder %s50, %s64
    %p66 = scmp.eq.s32.totalorder %s19, 0
    %p67 = por %p65, %p66
    %s69 = sadd.s32 %s68, 1
    %p72 = scmp.eq.s32.totalorder %s13, 1
    %p73 = scmp.ne.s32.totalorder %s68, %s70
    %p74 = scmp.eq.s32.totalorder %s13, 0
    %p75 = por %p73, %p74
    %p76 = scmp.ne.s32.totalorder %s68, %s70
    %p77 = scmp.eq.s32.totalorder %s18, 1
    %p78 = por %p76, %p77
    %p79 = scmp.ne.s32.totalorder %s70, %s71
    %p80 = scmp.eq.s32.totalorder %s18, 0
    %p81 = por %p79, %p80
    %p82 = scmp.ne.s32.totalorder %s70, %s71
    %p83 = scmp.eq.s32.totalorder %s19, 1
    %p84 = por %p82, %p83
    %p86 = scmp.ne.s32.totalorder %s71, %s85
    %p87 = scmp.eq.s32.totalorder %s19, 0
    %p88 = por %p86, %p87
    %s90 = sadd.s32 %s89, 1
    %p93 = scmp.eq.s32.totalorder %s13, 1
    %p94 = scmp.ne.s32.totalorder %s89, %s91
    %p95 = scmp.eq.s32.totalorder %s13, 0
    %p96 = por %p94, %p95
    %p97 = scmp.ne.s32.totalorder %s89, %s91
    %p98 = scmp.eq.s32.totalorder %s18, 1
    %p99 = por %p97, %p98
    %p100 = scmp.ne.s32.totalorder %s91, %s92
    %p101 = scmp.eq.s32.totalorder %s18, 0
    %p102 = por %p100, %p101
    %p103 = scmp.ne.s32.totalorder %s91, %s92
    %p104 = scmp.eq.s32.totalorder %s19, 1
    %p105 = por %p103, %p104
    %p107 = scmp.ne.s32.totalorder %s92, %s106
    %p108 = scmp.eq.s32.totalorder %s19, 0
    %p109 = por %p107, %p108
    %s111 = sadd.s32 %s110, 1
    %p114 = scmp.eq.s32.totalorder %s13, 1
    %p115 = scmp.ne.s32.totalorder %s110, %s112
    %p116 = scmp.eq.s32.totalorder %s13, 0
    %p117 = por %p115, %p116
    %p118 = scmp.ne.s32.totalorder %s110, %s112
    %p119 = scmp.eq.s32.totalorder %s18, 1
    %p120 = por %p118, %p119
    %p121 = scmp.ne.s32.totalorder %s112, %s113
    %p122 = scmp.eq.s32.totalorder %s18, 0
    %p123 = por %p121, %p122
    %p124 = scmp.ne.s32.totalorder %s112, %s113
    %p125 = scmp.eq.s32.totalorder %s19, 1
    %p126 = por %p124, %p125
    %p128 = scmp.ne.s32.totalorder %s113, %s127
    %p129 = scmp.eq.s32.totalorder %s19, 0
    %p130 = por %p128, %p129
    %s132 = sadd.s32 %s131, 1
    %p135 = scmp.eq.s32.totalorder %s13, 1
    %p136 = scmp.ne.s32.totalorder %s131, %s133
    %p137 = scmp.eq.s32.totalorder %s13, 0
    %p138 = por %p136, %p137
    %p139 = scmp.ne.s32.totalorder %s131, %s133
    %p140 = scmp.eq.s32.totalorder %s18, 1
    %p141 = por %p139, %p140
    %p142 = scmp.ne.s32.totalorder %s133, %s134
    %p143 = scmp.eq.s32.totalorder %s18, 0
    %p144 = por %p142, %p143
    %p145 = scmp.ne.s32.totalorder %s133, %s134
    %p146 = scmp.eq.s32.totalorder %s19, 1
    %p147 = por %p145, %p146
    %p149 = scmp.ne.s32.totalorder %s134, %s148
    %p150 = scmp.eq.s32.totalorder %s19, 0
    %p151 = por %p149, %p150
    %s153 = sadd.s32 %s152, 1
    %p156 = scmp.eq.s32.totalorder %s13, 1
    %p157 = scmp.ne.s32.totalorder %s152, %s154
    %p158 = scmp.eq.s32.totalorder %s13, 0
    %p159 = por %p157, %p158
    %p160 = scmp.ne.s32.totalorder %s152, %s154
    %p161 = scmp.eq.s32.totalorder %s18, 1
    %p162 = por %p160, %p161
    %p163 = scmp.ne.s32.totalorder %s154, %s155
    %p164 = scmp.eq.s32.totalorder %s18, 0
    %p165 = por %p163, %p164
    %p166 = scmp.ne.s32.totalorder %s154, %s155
    %p167 = scmp.eq.s32.totalorder %s19, 1
    %p168 = por %p166, %p167
    %p170 = scmp.ne.s32.totalorder %s155, %s169
    %p171 = scmp.eq.s32.totalorder %s19, 0
    %p172 = por %p170, %p171
    %s173 = ssub.s32 %s13, %s20
    %p174 = scmp.eq.s32.totalorder %s173, 0
    %s176 = sadd.s32 %s175, 1
    %s177 = scalar_select %p174, %s175, %s176
    %p180 = pneg %p174
    %p181 = scmp.eq.s32.totalorder %s13, 1
    %p182 = por %p180, %p181
    %p183 = scmp.ne.s32.totalorder %s175, %s178
    %p184 = scmp.eq.s32.totalorder %s13, 0
    %p185 = por %p183, %p184
    %p186 = scmp.ne.s32.totalorder %s175, %s178
    %p187 = scmp.eq.s32.totalorder %s18, 1
    %p188 = por %p186, %p187
    %p189 = scmp.ne.s32.totalorder %s178, %s179
    %p190 = scmp.eq.s32.totalorder %s18, 0
    %p191 = por %p189, %p190
    %p192 = scmp.ne.s32.totalorder %s178, %s179
    %p193 = scmp.eq.s32.totalorder %s19, 1
    %p194 = por %p192, %p193
    %p196 = scmp.ne.s32.totalorder %s179, %s195
    %p197 = scmp.eq.s32.totalorder %s19, 0
    %p198 = por %p196, %p197
    %p199 = scmp.le.s32.totalorder 1, %s13
    %p200 = scmp.lt.s32.totalorder %s13, 3
    %p201 = pnand %p199, %p200
    %p202 = pneg %p201
    // Predicated region
    $region9: #{gcn_n_layer_forward.1} parent=5 // pred_check
      _
    $region10: #{gcn_n_layer_forward.1} parent=5 // pred_check_branch
      %204 = sbr.rel (%p201) target = $region12
    $region11: #{gcn_n_layer_forward.1} parent=5 // pred_region
      %s205 = ssub.s32 %s13, 1
      // Predicated region
      $region13: #{gcn_n_layer_forward.1} parent=11 // pred_check
        %p206 = pneg %p60
      $region14: #{gcn_n_layer_forward.1} parent=11 // pred_check_branch
        %208 = sbr.rel (%p206) target = $region16
      $region15: #{gcn_n_layer_forward.1} parent=11 // pred_region
        _
      $region16: #{gcn_n_layer_forward.1} parent=11 // pred_fallthru
        _
      // Predicated region
      $region17: #{gcn_n_layer_forward.1} parent=11 // pred_check
        %p209 = pneg %p81
      $region18: #{gcn_n_layer_forward.1} parent=11 // pred_check_branch
        %211 = sbr.rel (%p209) target = $region20
      $region19: #{gcn_n_layer_forward.1} parent=11 // pred_region
        _
      $region20: #{gcn_n_layer_forward.1} parent=11 // pred_fallthru
        _
      // Predicated region
      $region21: #{gcn_n_layer_forward.1} parent=11 // pred_check
        %p212 = pneg %p102
      $region22: #{gcn_n_layer_forward.1} parent=11 // pred_check_branch
        %214 = sbr.rel (%p212) target = $region24
      $region23: #{gcn_n_layer_forward.1} parent=11 // pred_region
        _
      $region24: #{gcn_n_layer_forward.1} parent=11 // pred_fallthru
        _
      // Predicated region
      $region25: #{gcn_n_layer_forward.1} parent=11 // pred_check
        %p215 = pneg %p123
      $region26: #{gcn_n_layer_forward.1} parent=11 // pred_check_branch
        %217 = sbr.rel (%p215) target = $region28
      $region27: #{gcn_n_layer_forward.1} parent=11 // pred_region
        _
      $region28: #{gcn_n_layer_forward.1} parent=11 // pred_fallthru
        _
      // Predicated region
      $region29: #{gcn_n_layer_forward.1} parent=11 // pred_check
        %p218 = pneg %p144
      $region30: #{gcn_n_layer_forward.1} parent=11 // pred_check_branch
        %220 = sbr.rel (%p218) target = $region32
      $region31: #{gcn_n_layer_forward.1} parent=11 // pred_region
        _
      $region32: #{gcn_n_layer_forward.1} parent=11 // pred_fallthru
        _
      // Predicated region
      $region33: #{gcn_n_layer_forward.1} parent=11 // pred_check
        %p221 = pneg %p165
      $region34: #{gcn_n_layer_forward.1} parent=11 // pred_check_branch
        %223 = sbr.rel (%p221) target = $region36
      $region35: #{gcn_n_layer_forward.1} parent=11 // pred_region
        _
      $region36: #{gcn_n_layer_forward.1} parent=11 // pred_fallthru
        _
    $region12: #{gcn_n_layer_forward.1} parent=5 // pred_fallthru
      _
    %p224 = scmp.lt.s32.totalorder %s13, 2
    // Predicated region
    $region37: #{gcn_n_layer_forward.1} parent=5 // pred_check
      %p225 = pneg %p224
    $region38: #{gcn_n_layer_forward.1} parent=5 // pred_check_branch
      %227 = sbr.rel (%p225) target = $region40
    $region39: #{gcn_n_layer_forward.1} parent=5 // pred_region
      // Predicated region
      $region41: #{gcn_n_layer_forward.1} parent=39 // pred_check
        %p228 = pneg %p33
      $region42: #{gcn_n_layer_forward.1} parent=39 // pred_check_branch
        %230 = sbr.rel (%p228) target = $region44
      $region43: #{gcn_n_layer_forward.1} parent=39 // pred_region
        %s231 = smul.u32 32, %s13
        %p232 = scmp.lt.s32.totalorder %s231, 63
        %s233 = scalar_select %p232, %s231, 63
        %s234 = smul.addr %s233, 8
        %s235 = scalar_lea.vmem %s0, %s234
        %s236 = smul.u32 32, %s13
      $region44: #{gcn_n_layer_forward.1} parent=39 // pred_fallthru
        _
    $region40: #{gcn_n_layer_forward.1} parent=5 // pred_fallthru
      _
    %p237 = scmp.le.s32.totalorder 1, %s13
    %p238 = scmp.lt.s32.totalorder %s13, 3
    %p239 = pnand %p237, %p238
    %p240 = pneg %p239
    // Predicated region
    $region45: #{gcn_n_layer_forward.1} parent=5 // pred_check
      _
    $region46: #{gcn_n_layer_forward.1} parent=5 // pred_check_branch
      %242 = sbr.rel (%p239) target = $region48
    $region47: #{gcn_n_layer_forward.1} parent=5 // pred_region
      %s243 = ssub.s32 %s13, 1
      %s244 = smul.u32 32, %s18
      %p245 = scmp.lt.s32.totalorder %s244, 63
      %s246 = scalar_select %p245, %s244, 63
      %s247 = smul.addr %s246, 8
      %s248 = scalar_lea.vmem %s0, %s247
      %p249 = pneg %p39
      %p250 = pneg %p36
      %p251 = pneg %p60
      %p252 = pneg %p57
      %p253 = pneg %p81
      %p254 = pneg %p78
      %p255 = pneg %p102
      %p256 = pneg %p99
      %p257 = pneg %p123
      %p258 = pneg %p120
      %p259 = pneg %p144
      %p260 = pneg %p141
      %p261 = pneg %p165
      %p262 = pneg %p162
      %p263 = pneg %p191
      %p264 = pneg %p188
      %s265 = smul.u32 32, %s18
      %p266 = scmp.lt.s32.totalorder %s265, 63
      %s267 = scalar_select %p266, %s265, 63
      %s268 = smul.addr %s267, 8
      %s269 = scalar_lea.vmem %s7, %s268
      %s270 = smul.u32 32, %s18
      %p271 = scmp.lt.s32.totalorder %s270, 63
      %s272 = scalar_select %p271, %s270, 63
      %s273 = smul.addr %s272, 8
      %s274 = scalar_lea.vmem %s0, %s273
      %s275 = smul.u32 32, %s18
      %s276 = smul.u32 32, %s18
      %p277 = scmp.lt.s32.totalorder %s276, 63
      %s278 = scalar_select %p277, %s276, 63
      %s279 = smul.addr %s278, 8
      %s280 = scalar_lea.vmem %s7, %s279
      %s281 = smul.u32 32, %s18
      %v282 = vld [vmem:[%s274] sm:$0xff]
      %v283 = vld [vmem:[%s274 + $0x8] sm:$0xff]
      %v284 = vld [vmem:[%s274 + $0x10] sm:$0xff]
      %v285 = vld [vmem:[%s274 + $0x18] sm:$0xff]
      %v286 = vld [vmem:[%s274 + $0x20] sm:$0xff]
      %v287 = vld [vmem:[%s274 + $0x28] sm:$0xff]
      %v288 = vld [vmem:[%s274 + $0x30] sm:$0xff]
      %v289 = vld [vmem:[%s274 + $0x38] sm:$0xff]
      %v290 = vld [vmem:[%s274 + $0x40] sm:$0xff]
      %v291 = vld [vmem:[%s274 + $0x48] sm:$0xff]
      %v292 = vld [vmem:[%s274 + $0x50] sm:$0xff]
      %v293 = vld [vmem:[%s274 + $0x58] sm:$0xff]
      %v294 = vld [vmem:[%s274 + $0x60] sm:$0xff]
      %v295 = vld [vmem:[%s274 + $0x68] sm:$0xff]
      %v296 = vld [vmem:[%s274 + $0x70] sm:$0xff]
      %v297 = vld [vmem:[%s274 + $0x78] sm:$0xff]
      %v298 = vld [vmem:[%s274 + $0x80] sm:$0xff]
      %v299 = vld [vmem:[%s274 + $0x88] sm:$0xff]
      %v300 = vld [vmem:[%s274 + $0x90] sm:$0xff]
      %v301 = vld [vmem:[%s274 + $0x98] sm:$0xff]
      %v302 = vld [vmem:[%s274 + $0xa0] sm:$0xff]
      %v303 = vld [vmem:[%s274 + $0xa8] sm:$0xff]
      %v304 = vld [vmem:[%s274 + $0xb0] sm:$0xff]
      %v305 = vld [vmem:[%s274 + $0xb8] sm:$0xff]
      %v306 = vld [vmem:[%s274 + $0xc0] sm:$0xff]
      %v307 = vld [vmem:[%s274 + $0xc8] sm:$0xff]
      %v308 = vld [vmem:[%s274 + $0xd0] sm:$0xff]
      %v309 = vld [vmem:[%s274 + $0xd8] sm:$0xff]
      %v310 = vld [vmem:[%s274 + $0xe0] sm:$0xff]
      %v311 = vld [vmem:[%s274 + $0xe8] sm:$0xff]
      %v312 = vld [vmem:[%s274 + $0xf0] sm:$0xff]
      %v313 = vld [vmem:[%s274 + $0xf8] sm:$0xff]
      %v314 = vld [vmem:[%s1] sm:$0xff]
      %v315 = vld [vmem:[%s1 + $0x8] sm:$0xff]
      %v316 = vld [vmem:[%s1 + $0x10] sm:$0xff]
      %v317 = vld [vmem:[%s1 + $0x18] sm:$0xff]
      %v318 = vld [vmem:[%s1 + $0x20] sm:$0xff]
      %v319 = vld [vmem:[%s1 + $0x28] sm:$0xff]
      %v320 = vld [vmem:[%s1 + $0x30] sm:$0xff]
      %v321 = vld [vmem:[%s1 + $0x38] sm:$0xff]
      %v322 = vld [vmem:[%s1 + $0x40] sm:$0xff]
      %v323 = vld [vmem:[%s1 + $0x48] sm:$0xff]
      %v324 = vld [vmem:[%s1 + $0x50] sm:$0xff]
      %v325 = vld [vmem:[%s1 + $0x58] sm:$0xff]
      %v326 = vld [vmem:[%s1 + $0x60] sm:$0xff]
      %v327 = vld [vmem:[%s1 + $0x68] sm:$0xff]
      %v328 = vld [vmem:[%s1 + $0x70] sm:$0xff]
      %v329 = vld [vmem:[%s1 + $0x78] sm:$0xff]
      %v330 = vld [vmem:[%s2] sm:$0x1]
      %v332 = vlaneseq
      %v333 = vshrl.u32 %v332, 7
      %v334 = vsub.s32 0, %v333
      %v335 = vrot.slane %v330, %v334
      %337 = vmatprep.subr.mxu0 0.0
      %338 = vmatpush1.msra.mxu0 %v329
      %339 = vmatprep.subr.mxu0 0.0
      %340 = vmatpush1.msra.mxu0 %v328
      %341 = vmatprep.subr.mxu0 0.0
      %342 = vmatpush1.msra.mxu0 %v327
      %343 = vmatprep.subr.mxu0 0.0
      %344 = vmatpush1.msra.mxu0 %v326
      %345 = vmatprep.subr.mxu0 0.0
      %346 = vmatpush1.msra.mxu0 %v325
      %347 = vmatprep.subr.mxu0 0.0
      %348 = vmatpush1.msra.mxu0 %v324
      %349 = vmatprep.subr.mxu0 0.0
      %350 = vmatpush1.msra.mxu0 %v323
      %351 = vmatprep.subr.mxu0 0.0
      %352 = vmatpush1.msra.mxu0 %v322
      %353 = vmatprep.subr.mxu0 0.0
      %354 = vmatpush1.msra.mxu0 %v321
      %355 = vmatprep.subr.mxu0 0.0
      %356 = vmatpush1.msra.mxu0 %v320
      %357 = vmatprep.subr.mxu0 0.0
      %358 = vmatpush1.msra.mxu0 %v319
      %359 = vmatprep.subr.mxu0 0.0
      %360 = vmatpush1.msra.mxu0 %v318
      %361 = vmatprep.subr.mxu0 0.0
      %362 = vmatpush1.msra.mxu0 %v317
      %363 = vmatprep.subr.mxu0 0.0
      %364 = vmatpush1.msra.mxu0 %v316
      %365 = vmatprep.subr.mxu0 0.0
      %366 = vmatpush1.msra.mxu0 %v315
      %367 = vmatprep.subr.mxu0 0.0
      %368 = vmatpush1.msra.mxu0 %v314
      %369 = vmatprep.subr.mxu0 0.0
      %370 = vmatpush2.msra.mxu0 0.0
      %371 = vmatprep.subr.mxu0 0.0
      %372 = vmatpush2.msra.mxu0 0.0
      %373 = vmatprep.subr.mxu0 0.0
      %374 = vmatpush2.msra.mxu0 0.0
      %375 = vmatprep.subr.mxu0 0.0
      %376 = vmatpush2.msra.mxu0 0.0
      %377 = vmatprep.subr.mxu0 0.0
      %378 = vmatpush2.msra.mxu0 0.0
      %379 = vmatprep.subr.mxu0 0.0
      %380 = vmatpush2.msra.mxu0 0.0
      %381 = vmatprep.subr.mxu0 0.0
      %382 = vmatpush2.msra.mxu0 0.0
      %383 = vmatprep.subr.mxu0 0.0
      %384 = vmatpush2.msra.mxu0 0.0
      %385 = vmatprep.subr.mxu0 0.0
      %386 = vmatpush2.msra.mxu0 0.0
      %387 = vmatprep.subr.mxu0 0.0
      %388 = vmatpush2.msra.mxu0 0.0
      %389 = vmatprep.subr.mxu0 0.0
      %390 = vmatpush2.msra.mxu0 0.0
      %391 = vmatprep.subr.mxu0 0.0
      %392 = vmatpush2.msra.mxu0 0.0
      %393 = vmatprep.subr.mxu0 0.0
      %394 = vmatpush2.msra.mxu0 0.0
      %395 = vmatprep.subr.mxu0 0.0
      %396 = vmatpush2.msra.mxu0 0.0
      %397 = vmatprep.subr.mxu0 0.0
      %398 = vmatpush2.msra.mxu0 0.0
      %399 = vmatprep.subr.mxu0 0.0
      %400 = vmatpush2.msra.mxu0 0.0
      %401 = vmatprep.mubr.f32.mxu0 0.0
      %402 = vmatmul.mubr.f32.gmra.mxu0 %v282
      %v403 = vpop.f32.mrf.mxu0
      %v404 = vadd.f32 %v335, %v403
      %v405 = vpop.f32.mrf.mxu0
      %406 = vmatprep.mubr.f32.mxu0 0.0
      %407 = vmatmul.mubr.f32.gmra.mxu0 %v283
      %v408 = vpop.f32.mrf.mxu0
      %v409 = vadd.f32 %v335, %v408
      %v410 = vpop.f32.mrf.mxu0
      %411 = vmatprep.mubr.f32.mxu0 0.0
      %412 = vmatmul.mubr.f32.gmra.mxu0 %v284
      %v413 = vpop.f32.mrf.mxu0
      %v414 = vadd.f32 %v335, %v413
      %v415 = vpop.f32.mrf.mxu0
      %416 = vmatprep.mubr.f32.mxu0 0.0
      %417 = vmatmul.mubr.f32.gmra.mxu0 %v285
      %v418 = vpop.f32.mrf.mxu0
      %v419 = vadd.f32 %v335, %v418
      %v420 = vpop.f32.mrf.mxu0
      %421 = vmatprep.mubr.f32.mxu0 0.0
      %422 = vmatmul.mubr.f32.gmra.mxu0 %v286
      %v423 = vpop.f32.mrf.mxu0
      %v424 = vadd.f32 %v335, %v423
      %v425 = vpop.f32.mrf.mxu0
      %426 = vmatprep.mubr.f32.mxu0 0.0
      %427 = vmatmul.mubr.f32.gmra.mxu0 %v287
      %v428 = vpop.f32.mrf.mxu0
      %v429 = vadd.f32 %v335, %v428
      %v430 = vpop.f32.mrf.mxu0
      %431 = vmatprep.mubr.f32.mxu0 0.0
      %432 = vmatmul.mubr.f32.gmra.mxu0 %v288
      %v433 = vpop.f32.mrf.mxu0
      %v434 = vadd.f32 %v335, %v433
      %v435 = vpop.f32.mrf.mxu0
      %436 = vmatprep.mubr.f32.mxu0 0.0
      %437 = vmatmul.mubr.f32.gmra.mxu0 %v289
      %v438 = vpop.f32.mrf.mxu0
      %v439 = vadd.f32 %v335, %v438
      %v440 = vpop.f32.mrf.mxu0
      %441 = vmatprep.mubr.f32.mxu0 0.0
      %442 = vmatmul.mubr.f32.gmra.mxu0 %v290
      %v443 = vpop.f32.mrf.mxu0
      %v444 = vadd.f32 %v335, %v443
      %v445 = vpop.f32.mrf.mxu0
      %446 = vmatprep.mubr.f32.mxu0 0.0
      %447 = vmatmul.mubr.f32.gmra.mxu0 %v291
      %v448 = vpop.f32.mrf.mxu0
      %v449 = vadd.f32 %v335, %v448
      %v450 = vpop.f32.mrf.mxu0
      %451 = vmatprep.mubr.f32.mxu0 0.0
      %452 = vmatmul.mubr.f32.gmra.mxu0 %v292
      %v453 = vpop.f32.mrf.mxu0
      %v454 = vadd.f32 %v335, %v453
      %v455 = vpop.f32.mrf.mxu0
      %456 = vmatprep.mubr.f32.mxu0 0.0
      %457 = vmatmul.mubr.f32.gmra.mxu0 %v293
      %v458 = vpop.f32.mrf.mxu0
      %v459 = vadd.f32 %v335, %v458
      %v460 = vpop.f32.mrf.mxu0
      %461 = vmatprep.mubr.f32.mxu0 0.0
      %462 = vmatmul.mubr.f32.gmra.mxu0 %v294
      %v463 = vpop.f32.mrf.mxu0
      %v464 = vadd.f32 %v335, %v463
      %v465 = vpop.f32.mrf.mxu0
      %466 = vmatprep.mubr.f32.mxu0 0.0
      %467 = vmatmul.mubr.f32.gmra.mxu0 %v295
      %v468 = vpop.f32.mrf.mxu0
      %v469 = vadd.f32 %v335, %v468
      %v470 = vpop.f32.mrf.mxu0
      %471 = vmatprep.mubr.f32.mxu0 0.0
      %472 = vmatmul.mubr.f32.gmra.mxu0 %v296
      %v473 = vpop.f32.mrf.mxu0
      %v474 = vadd.f32 %v335, %v473
      %v475 = vpop.f32.mrf.mxu0
      %476 = vmatprep.mubr.f32.mxu0 0.0
      %477 = vmatmul.mubr.f32.gmra.mxu0 %v297
      %v478 = vpop.f32.mrf.mxu0
      %v479 = vadd.f32 %v335, %v478
      %v480 = vpop.f32.mrf.mxu0
      %481 = vmatprep.mubr.f32.mxu0 0.0
      %482 = vmatmul.mubr.f32.gmra.mxu0 %v298
      %v483 = vpop.f32.mrf.mxu0
      %v484 = vadd.f32 %v335, %v483
      %v485 = vpop.f32.mrf.mxu0
      %486 = vmatprep.mubr.f32.mxu0 0.0
      %487 = vmatmul.mubr.f32.gmra.mxu0 %v299
      %v488 = vpop.f32.mrf.mxu0
      %v489 = vadd.f32 %v335, %v488
      %v490 = vpop.f32.mrf.mxu0
      %491 = vmatprep.mubr.f32.mxu0 0.0
      %492 = vmatmul.mubr.f32.gmra.mxu0 %v300
      %v493 = vpop.f32.mrf.mxu0
      %v494 = vadd.f32 %v335, %v493
      %v495 = vpop.f32.mrf.mxu0
      %496 = vmatprep.mubr.f32.mxu0 0.0
      %497 = vmatmul.mubr.f32.gmra.mxu0 %v301
      %v498 = vpop.f32.mrf.mxu0
      %v499 = vadd.f32 %v335, %v498
      %v500 = vpop.f32.mrf.mxu0
      %501 = vmatprep.mubr.f32.mxu0 0.0
      %502 = vmatmul.mubr.f32.gmra.mxu0 %v302
      %v503 = vpop.f32.mrf.mxu0
      %v504 = vadd.f32 %v335, %v503
      %v505 = vpop.f32.mrf.mxu0
      %506 = vmatprep.mubr.f32.mxu0 0.0
      %507 = vmatmul.mubr.f32.gmra.mxu0 %v303
      %v508 = vpop.f32.mrf.mxu0
      %v509 = vadd.f32 %v335, %v508
      %v510 = vpop.f32.mrf.mxu0
      %511 = vmatprep.mubr.f32.mxu0 0.0
      %512 = vmatmul.mubr.f32.gmra.mxu0 %v304
      %v513 = vpop.f32.mrf.mxu0
      %v514 = vadd.f32 %v335, %v513
      %v515 = vpop.f32.mrf.mxu0
      %516 = vmatprep.mubr.f32.mxu0 0.0
      %517 = vmatmul.mubr.f32.gmra.mxu0 %v305
      %v518 = vpop.f32.mrf.mxu0
      %v519 = vadd.f32 %v335, %v518
      %v520 = vpop.f32.mrf.mxu0
      %521 = vmatprep.mubr.f32.mxu0 0.0
      %522 = vmatmul.mubr.f32.gmra.mxu0 %v306
      %v523 = vpop.f32.mrf.mxu0
      %v524 = vadd.f32 %v335, %v523
      %v525 = vpop.f32.mrf.mxu0
      %526 = vmatprep.mubr.f32.mxu0 0.0
      %527 = vmatmul.mubr.f32.gmra.mxu0 %v307
      %v528 = vpop.f32.mrf.mxu0
      %v529 = vadd.f32 %v335, %v528
      %v530 = vpop.f32.mrf.mxu0
      %531 = vmatprep.mubr.f32.mxu0 0.0
      %532 = vmatmul.mubr.f32.gmra.mxu0 %v308
      %v533 = vpop.f32.mrf.mxu0
      %v534 = vadd.f32 %v335, %v533
      %v535 = vpop.f32.mrf.mxu0
      %536 = vmatprep.mubr.f32.mxu0 0.0
      %537 = vmatmul.mubr.f32.gmra.mxu0 %v309
      %v538 = vpop.f32.mrf.mxu0
      %v539 = vadd.f32 %v335, %v538
      %v540 = vpop.f32.mrf.mxu0
      %541 = vmatprep.mubr.f32.mxu0 0.0
      %542 = vmatmul.mubr.f32.gmra.mxu0 %v310
      %v543 = vpop.f32.mrf.mxu0
      %v544 = vadd.f32 %v335, %v543
      %v545 = vpop.f32.mrf.mxu0
      %546 = vmatprep.mubr.f32.mxu0 0.0
      %547 = vmatmul.mubr.f32.gmra.mxu0 %v311
      %v548 = vpop.f32.mrf.mxu0
      %v549 = vadd.f32 %v335, %v548
      %v550 = vpop.f32.mrf.mxu0
      %551 = vmatprep.mubr.f32.mxu0 0.0
      %552 = vmatmul.mubr.f32.gmra.mxu0 %v312
      %v553 = vpop.f32.mrf.mxu0
      %v554 = vadd.f32 %v335, %v553
      %v555 = vpop.f32.mrf.mxu0
      %556 = vmatprep.mubr.f32.mxu0 0.0
      %557 = vmatmul.mubr.f32.gmra.mxu0 %v313
      %v558 = vpop.f32.mrf.mxu0
      %v559 = vadd.f32 %v335, %v558
      %v560 = vpop.f32.mrf.mxu0
      %561 = vdwg.mxu0
      %v562 = vmax.f32 %v404, 0.0
      %v563 = vmax.f32 %v409, 0.0
      %v564 = vmax.f32 %v414, 0.0
      %v565 = vmax.f32 %v419, 0.0
      %v566 = vmax.f32 %v424, 0.0
      %v567 = vmax.f32 %v429, 0.0
      %v568 = vmax.f32 %v434, 0.0
      %v569 = vmax.f32 %v439, 0.0
      %v570 = vmax.f32 %v444, 0.0
      %v571 = vmax.f32 %v449, 0.0
      %v572 = vmax.f32 %v454, 0.0
      %v573 = vmax.f32 %v459, 0.0
      %v574 = vmax.f32 %v464, 0.0
      %v575 = vmax.f32 %v469, 0.0
      %v576 = vmax.f32 %v474, 0.0
      %v577 = vmax.f32 %v479, 0.0
      %v578 = vmax.f32 %v484, 0.0
      %v579 = vmax.f32 %v489, 0.0
      %v580 = vmax.f32 %v494, 0.0
      %v581 = vmax.f32 %v499, 0.0
      %v582 = vmax.f32 %v504, 0.0
      %v583 = vmax.f32 %v509, 0.0
      %v584 = vmax.f32 %v514, 0.0
      %v585 = vmax.f32 %v519, 0.0
      %v586 = vmax.f32 %v524, 0.0
      %v587 = vmax.f32 %v529, 0.0
      %v588 = vmax.f32 %v534, 0.0
      %v589 = vmax.f32 %v539, 0.0
      %v590 = vmax.f32 %v544, 0.0
      %v591 = vmax.f32 %v549, 0.0
      %v592 = vmax.f32 %v554, 0.0
      %v593 = vmax.f32 %v559, 0.0
      %v594 = vld [vmem:[%s3] sm:$0xff]
      %v595 = vld [vmem:[%s3 + $0x8] sm:$0xff]
      %v596 = vld [vmem:[%s3 + $0x10] sm:$0xff]
      %v597 = vld [vmem:[%s3 + $0x18] sm:$0xff]
      %v598 = vld [vmem:[%s3 + $0x20] sm:$0xff]
      %v599 = vld [vmem:[%s3 + $0x28] sm:$0xff]
      %v600 = vld [vmem:[%s3 + $0x30] sm:$0xff]
      %v601 = vld [vmem:[%s3 + $0x38] sm:$0xff]
      %v602 = vld [vmem:[%s3 + $0x40] sm:$0xff]
      %v603 = vld [vmem:[%s3 + $0x48] sm:$0xff]
      %v604 = vld [vmem:[%s3 + $0x50] sm:$0xff]
      %v605 = vld [vmem:[%s3 + $0x58] sm:$0xff]
      %v606 = vld [vmem:[%s3 + $0x60] sm:$0xff]
      %v607 = vld [vmem:[%s3 + $0x68] sm:$0xff]
      %v608 = vld [vmem:[%s3 + $0x70] sm:$0xff]
      %v609 = vld [vmem:[%s3 + $0x78] sm:$0xff]
      %v610 = vld [vmem:[%s4] sm:$0x1]
      %v612 = vlaneseq
      %v613 = vshrl.u32 %v612, 7
      %v614 = vsub.s32 0, %v613
      %v615 = vrot.slane %v610, %v614
      %617 = vmatprep.subr.mxu0 0.0
      %618 = vmatpush1.msra.mxu0 %v609
      %619 = vmatprep.subr.mxu0 0.0
      %620 = vmatpush1.msra.mxu0 %v608
      %621 = vmatprep.subr.mxu0 0.0
      %622 = vmatpush1.msra.mxu0 %v607
      %623 = vmatprep.subr.mxu0 0.0
      %624 = vmatpush1.msra.mxu0 %v606
      %625 = vmatprep.subr.mxu0 0.0
      %626 = vmatpush1.msra.mxu0 %v605
      %627 = vmatprep.subr.mxu0 0.0
      %628 = vmatpush1.msra.mxu0 %v604
      %629 = vmatprep.subr.mxu0 0.0
      %630 = vmatpush1.msra.mxu0 %v603
      %631 = vmatprep.subr.mxu0 0.0
      %632 = vmatpush1.msra.mxu0 %v602
      %633 = vmatprep.subr.mxu0 0.0
      %634 = vmatpush1.msra.mxu0 %v601
      %635 = vmatprep.subr.mxu0 0.0
      %636 = vmatpush1.msra.mxu0 %v600
      %637 = vmatprep.subr.mxu0 0.0
      %638 = vmatpush1.msra.mxu0 %v599
      %639 = vmatprep.subr.mxu0 0.0
      %640 = vmatpush1.msra.mxu0 %v598
      %641 = vmatprep.subr.mxu0 0.0
      %642 = vmatpush1.msra.mxu0 %v597
      %643 = vmatprep.subr.mxu0 0.0
      %644 = vmatpush1.msra.mxu0 %v596
      %645 = vmatprep.subr.mxu0 0.0
      %646 = vmatpush1.msra.mxu0 %v595
      %647 = vmatprep.subr.mxu0 0.0
      %648 = vmatpush1.msra.mxu0 %v594
      %649 = vmatprep.subr.mxu0 0.0
      %650 = vmatpush2.msra.mxu0 0.0
      %651 = vmatprep.subr.mxu0 0.0
      %652 = vmatpush2.msra.mxu0 0.0
      %653 = vmatprep.subr.mxu0 0.0
      %654 = vmatpush2.msra.mxu0 0.0
      %655 = vmatprep.subr.mxu0 0.0
      %656 = vmatpush2.msra.mxu0 0.0
      %657 = vmatprep.subr.mxu0 0.0
      %658 = vmatpush2.msra.mxu0 0.0
      %659 = vmatprep.subr.mxu0 0.0
      %660 = vmatpush2.msra.mxu0 0.0
      %661 = vmatprep.subr.mxu0 0.0
      %662 = vmatpush2.msra.mxu0 0.0
      %663 = vmatprep.subr.mxu0 0.0
      %664 = vmatpush2.msra.mxu0 0.0
      %665 = vmatprep.subr.mxu0 0.0
      %666 = vmatpush2.msra.mxu0 0.0
      %667 = vmatprep.subr.mxu0 0.0
      %668 = vmatpush2.msra.mxu0 0.0
      %669 = vmatprep.subr.mxu0 0.0
      %670 = vmatpush2.msra.mxu0 0.0
      %671 = vmatprep.subr.mxu0 0.0
      %672 = vmatpush2.msra.mxu0 0.0
      %673 = vmatprep.subr.mxu0 0.0
      %674 = vmatpush2.msra.mxu0 0.0
      %675 = vmatprep.subr.mxu0 0.0
      %676 = vmatpush2.msra.mxu0 0.0
      %677 = vmatprep.subr.mxu0 0.0
      %678 = vmatpush2.msra.mxu0 0.0
      %679 = vmatprep.subr.mxu0 0.0
      %680 = vmatpush2.msra.mxu0 0.0
      %681 = vmatprep.mubr.f32.mxu0 0.0
      %682 = vmatmul.mubr.f32.gmra.mxu0 %v562
      %v683 = vpop.f32.mrf.mxu0
      %v684 = vadd.f32 %v615, %v683
      %v685 = vpop.f32.mrf.mxu0
      %686 = vmatprep.mubr.f32.mxu0 0.0
      %687 = vmatmul.mubr.f32.gmra.mxu0 %v563
      %v688 = vpop.f32.mrf.mxu0
      %v689 = vadd.f32 %v615, %v688
      %v690 = vpop.f32.mrf.mxu0
      %691 = vmatprep.mubr.f32.mxu0 0.0
      %692 = vmatmul.mubr.f32.gmra.mxu0 %v564
      %v693 = vpop.f32.mrf.mxu0
      %v694 = vadd.f32 %v615, %v693
      %v695 = vpop.f32.mrf.mxu0
      %696 = vmatprep.mubr.f32.mxu0 0.0
      %697 = vmatmul.mubr.f32.gmra.mxu0 %v565
      %v698 = vpop.f32.mrf.mxu0
      %v699 = vadd.f32 %v615, %v698
      %v700 = vpop.f32.mrf.mxu0
      %701 = vmatprep.mubr.f32.mxu0 0.0
      %702 = vmatmul.mubr.f32.gmra.mxu0 %v566
      %v703 = vpop.f32.mrf.mxu0
      %v704 = vadd.f32 %v615, %v703
      %v705 = vpop.f32.mrf.mxu0
      %706 = vmatprep.mubr.f32.mxu0 0.0
      %707 = vmatmul.mubr.f32.gmra.mxu0 %v567
      %v708 = vpop.f32.mrf.mxu0
      %v709 = vadd.f32 %v615, %v708
      %v710 = vpop.f32.mrf.mxu0
      %711 = vmatprep.mubr.f32.mxu0 0.0
      %712 = vmatmul.mubr.f32.gmra.mxu0 %v568
      %v713 = vpop.f32.mrf.mxu0
      %v714 = vadd.f32 %v615, %v713
      %v715 = vpop.f32.mrf.mxu0
      %716 = vmatprep.mubr.f32.mxu0 0.0
      %717 = vmatmul.mubr.f32.gmra.mxu0 %v569
      %v718 = vpop.f32.mrf.mxu0
      %v719 = vadd.f32 %v615, %v718
      %v720 = vpop.f32.mrf.mxu0
      %721 = vmatprep.mubr.f32.mxu0 0.0
      %722 = vmatmul.mubr.f32.gmra.mxu0 %v570
      %v723 = vpop.f32.mrf.mxu0
      %v724 = vadd.f32 %v615, %v723
      %v725 = vpop.f32.mrf.mxu0
      %726 = vmatprep.mubr.f32.mxu0 0.0
      %727 = vmatmul.mubr.f32.gmra.mxu0 %v571
      %v728 = vpop.f32.mrf.mxu0
      %v729 = vadd.f32 %v615, %v728
      %v730 = vpop.f32.mrf.mxu0
      %731 = vmatprep.mubr.f32.mxu0 0.0
      %732 = vmatmul.mubr.f32.gmra.mxu0 %v572
      %v733 = vpop.f32.mrf.mxu0
      %v734 = vadd.f32 %v615, %v733
      %v735 = vpop.f32.mrf.mxu0
      %736 = vmatprep.mubr.f32.mxu0 0.0
      %737 = vmatmul.mubr.f32.gmra.mxu0 %v573
      %v738 = vpop.f32.mrf.mxu0
      %v739 = vadd.f32 %v615, %v738
      %v740 = vpop.f32.mrf.mxu0
      %741 = vmatprep.mubr.f32.mxu0 0.0
      %742 = vmatmul.mubr.f32.gmra.mxu0 %v574
      %v743 = vpop.f32.mrf.mxu0
      %v744 = vadd.f32 %v615, %v743
      %v745 = vpop.f32.mrf.mxu0
      %746 = vmatprep.mubr.f32.mxu0 0.0
      %747 = vmatmul.mubr.f32.gmra.mxu0 %v575
      %v748 = vpop.f32.mrf.mxu0
      %v749 = vadd.f32 %v615, %v748
      %v750 = vpop.f32.mrf.mxu0
      %751 = vmatprep.mubr.f32.mxu0 0.0
      %752 = vmatmul.mubr.f32.gmra.mxu0 %v576
      %v753 = vpop.f32.mrf.mxu0
      %v754 = vadd.f32 %v615, %v753
      %v755 = vpop.f32.mrf.mxu0
      %756 = vmatprep.mubr.f32.mxu0 0.0
      %757 = vmatmul.mubr.f32.gmra.mxu0 %v577
      %v758 = vpop.f32.mrf.mxu0
      %v759 = vadd.f32 %v615, %v758
      %v760 = vpop.f32.mrf.mxu0
      %761 = vmatprep.mubr.f32.mxu0 0.0
      %762 = vmatmul.mubr.f32.gmra.mxu0 %v578
      %v763 = vpop.f32.mrf.mxu0
      %v764 = vadd.f32 %v615, %v763
      %v765 = vpop.f32.mrf.mxu0
      %766 = vmatprep.mubr.f32.mxu0 0.0
      %767 = vmatmul.mubr.f32.gmra.mxu0 %v579
      %v768 = vpop.f32.mrf.mxu0
      %v769 = vadd.f32 %v615, %v768
      %v770 = vpop.f32.mrf.mxu0
      %771 = vmatprep.mubr.f32.mxu0 0.0
      %772 = vmatmul.mubr.f32.gmra.mxu0 %v580
      %v773 = vpop.f32.mrf.mxu0
      %v774 = vadd.f32 %v615, %v773
      %v775 = vpop.f32.mrf.mxu0
      %776 = vmatprep.mubr.f32.mxu0 0.0
      %777 = vmatmul.mubr.f32.gmra.mxu0 %v581
      %v778 = vpop.f32.mrf.mxu0
      %v779 = vadd.f32 %v615, %v778
      %v780 = vpop.f32.mrf.mxu0
      %781 = vmatprep.mubr.f32.mxu0 0.0
      %782 = vmatmul.mubr.f32.gmra.mxu0 %v582
      %v783 = vpop.f32.mrf.mxu0
      %v784 = vadd.f32 %v615, %v783
      %v785 = vpop.f32.mrf.mxu0
      %786 = vmatprep.mubr.f32.mxu0 0.0
      %787 = vmatmul.mubr.f32.gmra.mxu0 %v583
      %v788 = vpop.f32.mrf.mxu0
      %v789 = vadd.f32 %v615, %v788
      %v790 = vpop.f32.mrf.mxu0
      %791 = vmatprep.mubr.f32.mxu0 0.0
      %792 = vmatmul.mubr.f32.gmra.mxu0 %v584
      %v793 = vpop.f32.mrf.mxu0
      %v794 = vadd.f32 %v615, %v793
      %v795 = vpop.f32.mrf.mxu0
      %796 = vmatprep.mubr.f32.mxu0 0.0
      %797 = vmatmul.mubr.f32.gmra.mxu0 %v585
      %v798 = vpop.f32.mrf.mxu0
      %v799 = vadd.f32 %v615, %v798
      %v800 = vpop.f32.mrf.mxu0
      %801 = vmatprep.mubr.f32.mxu0 0.0
      %802 = vmatmul.mubr.f32.gmra.mxu0 %v586
      %v803 = vpop.f32.mrf.mxu0
      %v804 = vadd.f32 %v615, %v803
      %v805 = vpop.f32.mrf.mxu0
      %806 = vmatprep.mubr.f32.mxu0 0.0
      %807 = vmatmul.mubr.f32.gmra.mxu0 %v587
      %v808 = vpop.f32.mrf.mxu0
      %v809 = vadd.f32 %v615, %v808
      %v810 = vpop.f32.mrf.mxu0
      %811 = vmatprep.mubr.f32.mxu0 0.0
      %812 = vmatmul.mubr.f32.gmra.mxu0 %v588
      %v813 = vpop.f32.mrf.mxu0
      %v814 = vadd.f32 %v615, %v813
      %v815 = vpop.f32.mrf.mxu0
      %816 = vmatprep.mubr.f32.mxu0 0.0
      %817 = vmatmul.mubr.f32.gmra.mxu0 %v589
      %v818 = vpop.f32.mrf.mxu0
      %v819 = vadd.f32 %v615, %v818
      %v820 = vpop.f32.mrf.mxu0
      %821 = vmatprep.mubr.f32.mxu0 0.0
      %822 = vmatmul.mubr.f32.gmra.mxu0 %v590
      %v823 = vpop.f32.mrf.mxu0
      %v824 = vadd.f32 %v615, %v823
      %v825 = vpop.f32.mrf.mxu0
      %826 = vmatprep.mubr.f32.mxu0 0.0
      %827 = vmatmul.mubr.f32.gmra.mxu0 %v591
      %v828 = vpop.f32.mrf.mxu0
      %v829 = vadd.f32 %v615, %v828
      %v830 = vpop.f32.mrf.mxu0
      %831 = vmatprep.mubr.f32.mxu0 0.0
      %832 = vmatmul.mubr.f32.gmra.mxu0 %v592
      %v833 = vpop.f32.mrf.mxu0
      %v834 = vadd.f32 %v615, %v833
      %v835 = vpop.f32.mrf.mxu0
      %836 = vmatprep.mubr.f32.mxu0 0.0
      %837 = vmatmul.mubr.f32.gmra.mxu0 %v593
      %v838 = vpop.f32.mrf.mxu0
      %v839 = vadd.f32 %v615, %v838
      %v840 = vpop.f32.mrf.mxu0
      %841 = vdwg.mxu0
      %v842 = vmax.f32 %v684, 0.0
      %v843 = vmax.f32 %v689, 0.0
      %v844 = vmax.f32 %v694, 0.0
      %v845 = vmax.f32 %v699, 0.0
      %v846 = vmax.f32 %v704, 0.0
      %v847 = vmax.f32 %v709, 0.0
      %v848 = vmax.f32 %v714, 0.0
      %v849 = vmax.f32 %v719, 0.0
      %v850 = vmax.f32 %v724, 0.0
      %v851 = vmax.f32 %v729, 0.0
      %v852 = vmax.f32 %v734, 0.0
      %v853 = vmax.f32 %v739, 0.0
      %v854 = vmax.f32 %v744, 0.0
      %v855 = vmax.f32 %v749, 0.0
      %v856 = vmax.f32 %v754, 0.0
      %v857 = vmax.f32 %v759, 0.0
      %v858 = vmax.f32 %v764, 0.0
      %v859 = vmax.f32 %v769, 0.0
      %v860 = vmax.f32 %v774, 0.0
      %v861 = vmax.f32 %v779, 0.0
      %v862 = vmax.f32 %v784, 0.0
      %v863 = vmax.f32 %v789, 0.0
      %v864 = vmax.f32 %v794, 0.0
      %v865 = vmax.f32 %v799, 0.0
      %v866 = vmax.f32 %v804, 0.0
      %v867 = vmax.f32 %v809, 0.0
      %v868 = vmax.f32 %v814, 0.0
      %v869 = vmax.f32 %v819, 0.0
      %v870 = vmax.f32 %v824, 0.0
      %v871 = vmax.f32 %v829, 0.0
      %v872 = vmax.f32 %v834, 0.0
      %v873 = vmax.f32 %v839, 0.0
      %874 = vmatprep.subr.mxu0 0.0
      %875 = vmatpush1.msra.mxu0 %v609
      %876 = vmatprep.subr.mxu0 0.0
      %877 = vmatpush1.msra.mxu0 %v608
      %878 = vmatprep.subr.mxu0 0.0
      %879 = vmatpush1.msra.mxu0 %v607
      %880 = vmatprep.subr.mxu0 0.0
      %881 = vmatpush1.msra.mxu0 %v606
      %882 = vmatprep.subr.mxu0 0.0
      %883 = vmatpush1.msra.mxu0 %v605
      %884 = vmatprep.subr.mxu0 0.0
      %885 = vmatpush1.msra.mxu0 %v604
      %886 = vmatprep.subr.mxu0 0.0
      %887 = vmatpush1.msra.mxu0 %v603
      %888 = vmatprep.subr.mxu0 0.0
      %889 = vmatpush1.msra.mxu0 %v602
      %890 = vmatprep.subr.mxu0 0.0
      %891 = vmatpush1.msra.mxu0 %v601
      %892 = vmatprep.subr.mxu0 0.0
      %893 = vmatpush1.msra.mxu0 %v600
      %894 = vmatprep.subr.mxu0 0.0
      %895 = vmatpush1.msra.mxu0 %v599
      %896 = vmatprep.subr.mxu0 0.0
      %897 = vmatpush1.msra.mxu0 %v598
      %898 = vmatprep.subr.mxu0 0.0
      %899 = vmatpush1.msra.mxu0 %v597
      %900 = vmatprep.subr.mxu0 0.0
      %901 = vmatpush1.msra.mxu0 %v596
      %902 = vmatprep.subr.mxu0 0.0
      %903 = vmatpush1.msra.mxu0 %v595
      %904 = vmatprep.subr.mxu0 0.0
      %905 = vmatpush1.msra.mxu0 %v594
      %906 = vmatprep.subr.mxu0 0.0
      %907 = vmatpush2.msra.mxu0 0.0
      %908 = vmatprep.subr.mxu0 0.0
      %909 = vmatpush2.msra.mxu0 0.0
      %910 = vmatprep.subr.mxu0 0.0
      %911 = vmatpush2.msra.mxu0 0.0
      %912 = vmatprep.subr.mxu0 0.0
      %913 = vmatpush2.msra.mxu0 0.0
      %914 = vmatprep.subr.mxu0 0.0
      %915 = vmatpush2.msra.mxu0 0.0
      %916 = vmatprep.subr.mxu0 0.0
      %917 = vmatpush2.msra.mxu0 0.0
      %918 = vmatprep.subr.mxu0 0.0
      %919 = vmatpush2.msra.mxu0 0.0
      %920 = vmatprep.subr.mxu0 0.0
      %921 = vmatpush2.msra.mxu0 0.0
      %922 = vmatprep.subr.mxu0 0.0
      %923 = vmatpush2.msra.mxu0 0.0
      %924 = vmatprep.subr.mxu0 0.0
      %925 = vmatpush2.msra.mxu0 0.0
      %926 = vmatprep.subr.mxu0 0.0
      %927 = vmatpush2.msra.mxu0 0.0
      %928 = vmatprep.subr.mxu0 0.0
      %929 = vmatpush2.msra.mxu0 0.0
      %930 = vmatprep.subr.mxu0 0.0
      %931 = vmatpush2.msra.mxu0 0.0
      %932 = vmatprep.subr.mxu0 0.0
      %933 = vmatpush2.msra.mxu0 0.0
      %934 = vmatprep.subr.mxu0 0.0
      %935 = vmatpush2.msra.mxu0 0.0
      %936 = vmatprep.subr.mxu0 0.0
      %937 = vmatpush2.msra.mxu0 0.0
      %938 = vmatprep.mubr.f32.mxu0 0.0
      %939 = vmatmul.mubr.f32.gmra.mxu0 %v842
      %v940 = vpop.f32.mrf.mxu0
      %v941 = vadd.f32 %v615, %v940
      %v942 = vpop.f32.mrf.mxu0
      %943 = vmatprep.mubr.f32.mxu0 0.0
      %944 = vmatmul.mubr.f32.gmra.mxu0 %v843
      %v945 = vpop.f32.mrf.mxu0
      %v946 = vadd.f32 %v615, %v945
      %v947 = vpop.f32.mrf.mxu0
      %948 = vmatprep.mubr.f32.mxu0 0.0
      %949 = vmatmul.mubr.f32.gmra.mxu0 %v844
      %v950 = vpop.f32.mrf.mxu0
      %v951 = vadd.f32 %v615, %v950
      %v952 = vpop.f32.mrf.mxu0
      %953 = vmatprep.mubr.f32.mxu0 0.0
      %954 = vmatmul.mubr.f32.gmra.mxu0 %v845
      %v955 = vpop.f32.mrf.mxu0
      %v956 = vadd.f32 %v615, %v955
      %v957 = vpop.f32.mrf.mxu0
      %958 = vmatprep.mubr.f32.mxu0 0.0
      %959 = vmatmul.mubr.f32.gmra.mxu0 %v846
      %v960 = vpop.f32.mrf.mxu0
      %v961 = vadd.f32 %v615, %v960
      %v962 = vpop.f32.mrf.mxu0
      %963 = vmatprep.mubr.f32.mxu0 0.0
      %964 = vmatmul.mubr.f32.gmra.mxu0 %v847
      %v965 = vpop.f32.mrf.mxu0
      %v966 = vadd.f32 %v615, %v965
      %v967 = vpop.f32.mrf.mxu0
      %968 = vmatprep.mubr.f32.mxu0 0.0
      %969 = vmatmul.mubr.f32.gmra.mxu0 %v848
      %v970 = vpop.f32.mrf.mxu0
      %v971 = vadd.f32 %v615, %v970
      %v972 = vpop.f32.mrf.mxu0
      %973 = vmatprep.mubr.f32.mxu0 0.0
      %974 = vmatmul.mubr.f32.gmra.mxu0 %v849
      %v975 = vpop.f32.mrf.mxu0
      %v976 = vadd.f32 %v615, %v975
      %v977 = vpop.f32.mrf.mxu0
      %978 = vmatprep.mubr.f32.mxu0 0.0
      %979 = vmatmul.mubr.f32.gmra.mxu0 %v850
      %v980 = vpop.f32.mrf.mxu0
      %v981 = vadd.f32 %v615, %v980
      %v982 = vpop.f32.mrf.mxu0
      %983 = vmatprep.mubr.f32.mxu0 0.0
      %984 = vmatmul.mubr.f32.gmra.mxu0 %v851
      %v985 = vpop.f32.mrf.mxu0
      %v986 = vadd.f32 %v615, %v985
      %v987 = vpop.f32.mrf.mxu0
      %988 = vmatprep.mubr.f32.mxu0 0.0
      %989 = vmatmul.mubr.f32.gmra.mxu0 %v852
      %v990 = vpop.f32.mrf.mxu0
      %v991 = vadd.f32 %v615, %v990
      %v992 = vpop.f32.mrf.mxu0
      %993 = vmatprep.mubr.f32.mxu0 0.0
      %994 = vmatmul.mubr.f32.gmra.mxu0 %v853
      %v995 = vpop.f32.mrf.mxu0
      %v996 = vadd.f32 %v615, %v995
      %v997 = vpop.f32.mrf.mxu0
      %998 = vmatprep.mubr.f32.mxu0 0.0
      %999 = vmatmul.mubr.f32.gmra.mxu0 %v854
      %v1000 = vpop.f32.mrf.mxu0
      %v1001 = vadd.f32 %v615, %v1000
      %v1002 = vpop.f32.mrf.mxu0
      %1003 = vmatprep.mubr.f32.mxu0 0.0
      %1004 = vmatmul.mubr.f32.gmra.mxu0 %v855
      %v1005 = vpop.f32.mrf.mxu0
      %v1006 = vadd.f32 %v615, %v1005
      %v1007 = vpop.f32.mrf.mxu0
      %1008 = vmatprep.mubr.f32.mxu0 0.0
      %1009 = vmatmul.mubr.f32.gmra.mxu0 %v856
      %v1010 = vpop.f32.mrf.mxu0
      %v1011 = vadd.f32 %v615, %v1010
      %v1012 = vpop.f32.mrf.mxu0
      %1013 = vmatprep.mubr.f32.mxu0 0.0
      %1014 = vmatmul.mubr.f32.gmra.mxu0 %v857
      %v1015 = vpop.f32.mrf.mxu0
      %v1016 = vadd.f32 %v615, %v1015
      %v1017 = vpop.f32.mrf.mxu0
      %1018 = vmatprep.mubr.f32.mxu0 0.0
      %1019 = vmatmul.mubr.f32.gmra.mxu0 %v858
      %v1020 = vpop.f32.mrf.mxu0
      %v1021 = vadd.f32 %v615, %v1020
      %v1022 = vpop.f32.mrf.mxu0
      %1023 = vmatprep.mubr.f32.mxu0 0.0
      %1024 = vmatmul.mubr.f32.gmra.mxu0 %v859
      %v1025 = vpop.f32.mrf.mxu0
      %v1026 = vadd.f32 %v615, %v1025
      %v1027 = vpop.f32.mrf.mxu0
      %1028 = vmatprep.mubr.f32.mxu0 0.0
      %1029 = vmatmul.mubr.f32.gmra.mxu0 %v860
      %v1030 = vpop.f32.mrf.mxu0
      %v1031 = vadd.f32 %v615, %v1030
      %v1032 = vpop.f32.mrf.mxu0
      %1033 = vmatprep.mubr.f32.mxu0 0.0
      %1034 = vmatmul.mubr.f32.gmra.mxu0 %v861
      %v1035 = vpop.f32.mrf.mxu0
      %v1036 = vadd.f32 %v615, %v1035
      %v1037 = vpop.f32.mrf.mxu0
      %1038 = vmatprep.mubr.f32.mxu0 0.0
      %1039 = vmatmul.mubr.f32.gmra.mxu0 %v862
      %v1040 = vpop.f32.mrf.mxu0
      %v1041 = vadd.f32 %v615, %v1040
      %v1042 = vpop.f32.mrf.mxu0
      %1043 = vmatprep.mubr.f32.mxu0 0.0
      %1044 = vmatmul.mubr.f32.gmra.mxu0 %v863
      %v1045 = vpop.f32.mrf.mxu0
      %v1046 = vadd.f32 %v615, %v1045
      %v1047 = vpop.f32.mrf.mxu0
      %1048 = vmatprep.mubr.f32.mxu0 0.0
      %1049 = vmatmul.mubr.f32.gmra.mxu0 %v864
      %v1050 = vpop.f32.mrf.mxu0
      %v1051 = vadd.f32 %v615, %v1050
      %v1052 = vpop.f32.mrf.mxu0
      %1053 = vmatprep.mubr.f32.mxu0 0.0
      %1054 = vmatmul.mubr.f32.gmra.mxu0 %v865
      %v1055 = vpop.f32.mrf.mxu0
      %v1056 = vadd.f32 %v615, %v1055
      %v1057 = vpop.f32.mrf.mxu0
      %1058 = vmatprep.mubr.f32.mxu0 0.0
      %1059 = vmatmul.mubr.f32.gmra.mxu0 %v866
      %v1060 = vpop.f32.mrf.mxu0
      %v1061 = vadd.f32 %v615, %v1060
      %v1062 = vpop.f32.mrf.mxu0
      %1063 = vmatprep.mubr.f32.mxu0 0.0
      %1064 = vmatmul.mubr.f32.gmra.mxu0 %v867
      %v1065 = vpop.f32.mrf.mxu0
      %v1066 = vadd.f32 %v615, %v1065
      %v1067 = vpop.f32.mrf.mxu0
      %1068 = vmatprep.mubr.f32.mxu0 0.0
      %1069 = vmatmul.mubr.f32.gmra.mxu0 %v868
      %v1070 = vpop.f32.mrf.mxu0
      %v1071 = vadd.f32 %v615, %v1070
      %v1072 = vpop.f32.mrf.mxu0
      %1073 = vmatprep.mubr.f32.mxu0 0.0
      %1074 = vmatmul.mubr.f32.gmra.mxu0 %v869
      %v1075 = vpop.f32.mrf.mxu0
      %v1076 = vadd.f32 %v615, %v1075
      %v1077 = vpop.f32.mrf.mxu0
      %1078 = vmatprep.mubr.f32.mxu0 0.0
      %1079 = vmatmul.mubr.f32.gmra.mxu0 %v870
      %v1080 = vpop.f32.mrf.mxu0
      %v1081 = vadd.f32 %v615, %v1080
      %v1082 = vpop.f32.mrf.mxu0
      %1083 = vmatprep.mubr.f32.mxu0 0.0
      %1084 = vmatmul.mubr.f32.gmra.mxu0 %v871
      %v1085 = vpop.f32.mrf.mxu0
      %v1086 = vadd.f32 %v615, %v1085
      %v1087 = vpop.f32.mrf.mxu0
      %1088 = vmatprep.mubr.f32.mxu0 0.0
      %1089 = vmatmul.mubr.f32.gmra.mxu0 %v872
      %v1090 = vpop.f32.mrf.mxu0
      %v1091 = vadd.f32 %v615, %v1090
      %v1092 = vpop.f32.mrf.mxu0
      %1093 = vmatprep.mubr.f32.mxu0 0.0
      %1094 = vmatmul.mubr.f32.gmra.mxu0 %v873
      %v1095 = vpop.f32.mrf.mxu0
      %v1096 = vadd.f32 %v615, %v1095
      %v1097 = vpop.f32.mrf.mxu0
      %1098 = vdwg.mxu0
      %v1099 = vmax.f32 %v941, 0.0
      %v1100 = vmax.f32 %v946, 0.0
      %v1101 = vmax.f32 %v951, 0.0
      %v1102 = vmax.f32 %v956, 0.0
      %v1103 = vmax.f32 %v961, 0.0
      %v1104 = vmax.f32 %v966, 0.0
      %v1105 = vmax.f32 %v971, 0.0
      %v1106 = vmax.f32 %v976, 0.0
      %v1107 = vmax.f32 %v981, 0.0
      %v1108 = vmax.f32 %v986, 0.0
      %v1109 = vmax.f32 %v991, 0.0
      %v1110 = vmax.f32 %v996, 0.0
      %v1111 = vmax.f32 %v1001, 0.0
      %v1112 = vmax.f32 %v1006, 0.0
      %v1113 = vmax.f32 %v1011, 0.0
      %v1114 = vmax.f32 %v1016, 0.0
      %v1115 = vmax.f32 %v1021, 0.0
      %v1116 = vmax.f32 %v1026, 0.0
      %v1117 = vmax.f32 %v1031, 0.0
      %v1118 = vmax.f32 %v1036, 0.0
      %v1119 = vmax.f32 %v1041, 0.0
      %v1120 = vmax.f32 %v1046, 0.0
      %v1121 = vmax.f32 %v1051, 0.0
      %v1122 = vmax.f32 %v1056, 0.0
      %v1123 = vmax.f32 %v1061, 0.0
      %v1124 = vmax.f32 %v1066, 0.0
      %v1125 = vmax.f32 %v1071, 0.0
      %v1126 = vmax.f32 %v1076, 0.0
      %v1127 = vmax.f32 %v1081, 0.0
      %v1128 = vmax.f32 %v1086, 0.0
      %v1129 = vmax.f32 %v1091, 0.0
      %v1130 = vmax.f32 %v1096, 0.0
      %v1131 = vld [vmem:[%s5] sm:$0xff]
      %v1132 = vld [vmem:[%s5 + $0x8] sm:$0xff]
      %v1133 = vld [vmem:[%s5 + $0x10] sm:$0xff]
      %v1134 = vld [vmem:[%s5 + $0x18] sm:$0xff]
      %v1135 = vld [vmem:[%s5 + $0x20] sm:$0xff]
      %v1136 = vld [vmem:[%s5 + $0x28] sm:$0xff]
      %v1137 = vld [vmem:[%s5 + $0x30] sm:$0xff]
      %v1138 = vld [vmem:[%s5 + $0x38] sm:$0xff]
      %v1139 = vld [vmem:[%s5 + $0x40] sm:$0xff]
      %v1140 = vld [vmem:[%s5 + $0x48] sm:$0xff]
      %v1141 = vld [vmem:[%s5 + $0x50] sm:$0xff]
      %v1142 = vld [vmem:[%s5 + $0x58] sm:$0xff]
      %v1143 = vld [vmem:[%s5 + $0x60] sm:$0xff]
      %v1144 = vld [vmem:[%s5 + $0x68] sm:$0xff]
      %v1145 = vld [vmem:[%s5 + $0x70] sm:$0xff]
      %v1146 = vld [vmem:[%s5 + $0x78] sm:$0xff]
      %v1147 = vld [vmem:[%s6] sm:$0x1]
      %v1149 = vlaneseq
      %v1150 = vshrl.u32 %v1149, 7
      %v1151 = vsub.s32 0, %v1150
      %v1152 = vrot.slane %v1147, %v1151
      %1154 = vmatprep.subr.mxu0 0.0
      %1155 = vmatpush1.msra.mxu0 %v1146
      %1156 = vmatprep.subr.mxu0 0.0
      %1157 = vmatpush1.msra.mxu0 %v1145
      %1158 = vmatprep.subr.mxu0 0.0
      %1159 = vmatpush1.msra.mxu0 %v1144
      %1160 = vmatprep.subr.mxu0 0.0
      %1161 = vmatpush1.msra.mxu0 %v1143
      %1162 = vmatprep.subr.mxu0 0.0
      %1163 = vmatpush1.msra.mxu0 %v1142
      %1164 = vmatprep.subr.mxu0 0.0
      %1165 = vmatpush1.msra.mxu0 %v1141
      %1166 = vmatprep.subr.mxu0 0.0
      %1167 = vmatpush1.msra.mxu0 %v1140
      %1168 = vmatprep.subr.mxu0 0.0
      %1169 = vmatpush1.msra.mxu0 %v1139
      %1170 = vmatprep.subr.mxu0 0.0
      %1171 = vmatpush1.msra.mxu0 %v1138
      %1172 = vmatprep.subr.mxu0 0.0
      %1173 = vmatpush1.msra.mxu0 %v1137
      %1174 = vmatprep.subr.mxu0 0.0
      %1175 = vmatpush1.msra.mxu0 %v1136
      %1176 = vmatprep.subr.mxu0 0.0
      %1177 = vmatpush1.msra.mxu0 %v1135
      %1178 = vmatprep.subr.mxu0 0.0
      %1179 = vmatpush1.msra.mxu0 %v1134
      %1180 = vmatprep.subr.mxu0 0.0
      %1181 = vmatpush1.msra.mxu0 %v1133
      %1182 = vmatprep.subr.mxu0 0.0
      %1183 = vmatpush1.msra.mxu0 %v1132
      %1184 = vmatprep.subr.mxu0 0.0
      %1185 = vmatpush1.msra.mxu0 %v1131
      %1186 = vmatprep.subr.mxu0 0.0
      %1187 = vmatpush2.msra.mxu0 0.0
      %1188 = vmatprep.subr.mxu0 0.0
      %1189 = vmatpush2.msra.mxu0 0.0
      %1190 = vmatprep.subr.mxu0 0.0
      %1191 = vmatpush2.msra.mxu0 0.0
      %1192 = vmatprep.subr.mxu0 0.0
      %1193 = vmatpush2.msra.mxu0 0.0
      %1194 = vmatprep.subr.mxu0 0.0
      %1195 = vmatpush2.msra.mxu0 0.0
      %1196 = vmatprep.subr.mxu0 0.0
      %1197 = vmatpush2.msra.mxu0 0.0
      %1198 = vmatprep.subr.mxu0 0.0
      %1199 = vmatpush2.msra.mxu0 0.0
      %1200 = vmatprep.subr.mxu0 0.0
      %1201 = vmatpush2.msra.mxu0 0.0
      %1202 = vmatprep.subr.mxu0 0.0
      %1203 = vmatpush2.msra.mxu0 0.0
      %1204 = vmatprep.subr.mxu0 0.0
      %1205 = vmatpush2.msra.mxu0 0.0
      %1206 = vmatprep.subr.mxu0 0.0
      %1207 = vmatpush2.msra.mxu0 0.0
      %1208 = vmatprep.subr.mxu0 0.0
      %1209 = vmatpush2.msra.mxu0 0.0
      %1210 = vmatprep.subr.mxu0 0.0
      %1211 = vmatpush2.msra.mxu0 0.0
      %1212 = vmatprep.subr.mxu0 0.0
      %1213 = vmatpush2.msra.mxu0 0.0
      %1214 = vmatprep.subr.mxu0 0.0
      %1215 = vmatpush2.msra.mxu0 0.0
      %1216 = vmatprep.subr.mxu0 0.0
      %1217 = vmatpush2.msra.mxu0 0.0
      %1218 = vmatprep.mubr.f32.mxu0 0.0
      %1219 = vmatmul.mubr.f32.gmra.mxu0 %v1099
      %v1220 = vpop.f32.mrf.mxu0
      %v1221 = vadd.f32 %v1152, %v1220
      %v1222 = vpop.f32.mrf.mxu0
      %1223 = vmatprep.mubr.f32.mxu0 0.0
      %1224 = vmatmul.mubr.f32.gmra.mxu0 %v1100
      %v1225 = vpop.f32.mrf.mxu0
      %v1226 = vadd.f32 %v1152, %v1225
      %v1227 = vpop.f32.mrf.mxu0
      %1228 = vmatprep.mubr.f32.mxu0 0.0
      %1229 = vmatmul.mubr.f32.gmra.mxu0 %v1101
      %v1230 = vpop.f32.mrf.mxu0
      %v1231 = vadd.f32 %v1152, %v1230
      %v1232 = vpop.f32.mrf.mxu0
      %1233 = vmatprep.mubr.f32.mxu0 0.0
      %1234 = vmatmul.mubr.f32.gmra.mxu0 %v1102
      %v1235 = vpop.f32.mrf.mxu0
      %v1236 = vadd.f32 %v1152, %v1235
      %v1237 = vpop.f32.mrf.mxu0
      %1238 = vmatprep.mubr.f32.mxu0 0.0
      %1239 = vmatmul.mubr.f32.gmra.mxu0 %v1103
      %v1240 = vpop.f32.mrf.mxu0
      %v1241 = vadd.f32 %v1152, %v1240
      %v1242 = vpop.f32.mrf.mxu0
      %1243 = vmatprep.mubr.f32.mxu0 0.0
      %1244 = vmatmul.mubr.f32.gmra.mxu0 %v1104
      %v1245 = vpop.f32.mrf.mxu0
      %v1246 = vadd.f32 %v1152, %v1245
      %v1247 = vpop.f32.mrf.mxu0
      %1248 = vmatprep.mubr.f32.mxu0 0.0
      %1249 = vmatmul.mubr.f32.gmra.mxu0 %v1105
      %v1250 = vpop.f32.mrf.mxu0
      %v1251 = vadd.f32 %v1152, %v1250
      %v1252 = vpop.f32.mrf.mxu0
      %1253 = vmatprep.mubr.f32.mxu0 0.0
      %1254 = vmatmul.mubr.f32.gmra.mxu0 %v1106
      %v1255 = vpop.f32.mrf.mxu0
      %v1256 = vadd.f32 %v1152, %v1255
      %v1257 = vpop.f32.mrf.mxu0
      %1258 = vmatprep.mubr.f32.mxu0 0.0
      %1259 = vmatmul.mubr.f32.gmra.mxu0 %v1107
      %v1260 = vpop.f32.mrf.mxu0
      %v1261 = vadd.f32 %v1152, %v1260
      %v1262 = vpop.f32.mrf.mxu0
      %1263 = vmatprep.mubr.f32.mxu0 0.0
      %1264 = vmatmul.mubr.f32.gmra.mxu0 %v1108
      %v1265 = vpop.f32.mrf.mxu0
      %v1266 = vadd.f32 %v1152, %v1265
      %v1267 = vpop.f32.mrf.mxu0
      %1268 = vmatprep.mubr.f32.mxu0 0.0
      %1269 = vmatmul.mubr.f32.gmra.mxu0 %v1109
      %v1270 = vpop.f32.mrf.mxu0
      %v1271 = vadd.f32 %v1152, %v1270
      %v1272 = vpop.f32.mrf.mxu0
      %1273 = vmatprep.mubr.f32.mxu0 0.0
      %1274 = vmatmul.mubr.f32.gmra.mxu0 %v1110
      %v1275 = vpop.f32.mrf.mxu0
      %v1276 = vadd.f32 %v1152, %v1275
      %v1277 = vpop.f32.mrf.mxu0
      %1278 = vmatprep.mubr.f32.mxu0 0.0
      %1279 = vmatmul.mubr.f32.gmra.mxu0 %v1111
      %v1280 = vpop.f32.mrf.mxu0
      %v1281 = vadd.f32 %v1152, %v1280
      %v1282 = vpop.f32.mrf.mxu0
      %1283 = vmatprep.mubr.f32.mxu0 0.0
      %1284 = vmatmul.mubr.f32.gmra.mxu0 %v1112
      %v1285 = vpop.f32.mrf.mxu0
      %v1286 = vadd.f32 %v1152, %v1285
      %v1287 = vpop.f32.mrf.mxu0
      %1288 = vmatprep.mubr.f32.mxu0 0.0
      %1289 = vmatmul.mubr.f32.gmra.mxu0 %v1113
      %v1290 = vpop.f32.mrf.mxu0
      %v1291 = vadd.f32 %v1152, %v1290
      %v1292 = vpop.f32.mrf.mxu0
      %1293 = vmatprep.mubr.f32.mxu0 0.0
      %1294 = vmatmul.mubr.f32.gmra.mxu0 %v1114
      %v1295 = vpop.f32.mrf.mxu0
      %v1296 = vadd.f32 %v1152, %v1295
      %v1297 = vpop.f32.mrf.mxu0
      %1298 = vmatprep.mubr.f32.mxu0 0.0
      %1299 = vmatmul.mubr.f32.gmra.mxu0 %v1115
      %v1300 = vpop.f32.mrf.mxu0
      %v1301 = vadd.f32 %v1152, %v1300
      %v1302 = vpop.f32.mrf.mxu0
      %1303 = vmatprep.mubr.f32.mxu0 0.0
      %1304 = vmatmul.mubr.f32.gmra.mxu0 %v1116
      %v1305 = vpop.f32.mrf.mxu0
      %v1306 = vadd.f32 %v1152, %v1305
      %v1307 = vpop.f32.mrf.mxu0
      %1308 = vmatprep.mubr.f32.mxu0 0.0
      %1309 = vmatmul.mubr.f32.gmra.mxu0 %v1117
      %v1310 = vpop.f32.mrf.mxu0
      %v1311 = vadd.f32 %v1152, %v1310
      %v1312 = vpop.f32.mrf.mxu0
      %1313 = vmatprep.mubr.f32.mxu0 0.0
      %1314 = vmatmul.mubr.f32.gmra.mxu0 %v1118
      %v1315 = vpop.f32.mrf.mxu0
      %v1316 = vadd.f32 %v1152, %v1315
      %v1317 = vpop.f32.mrf.mxu0
      %1318 = vmatprep.mubr.f32.mxu0 0.0
      %1319 = vmatmul.mubr.f32.gmra.mxu0 %v1119
      %v1320 = vpop.f32.mrf.mxu0
      %v1321 = vadd.f32 %v1152, %v1320
      %v1322 = vpop.f32.mrf.mxu0
      %1323 = vmatprep.mubr.f32.mxu0 0.0
      %1324 = vmatmul.mubr.f32.gmra.mxu0 %v1120
      %v1325 = vpop.f32.mrf.mxu0
      %v1326 = vadd.f32 %v1152, %v1325
      %v1327 = vpop.f32.mrf.mxu0
      %1328 = vmatprep.mubr.f32.mxu0 0.0
      %1329 = vmatmul.mubr.f32.gmra.mxu0 %v1121
      %v1330 = vpop.f32.mrf.mxu0
      %v1331 = vadd.f32 %v1152, %v1330
      %v1332 = vpop.f32.mrf.mxu0
      %1333 = vmatprep.mubr.f32.mxu0 0.0
      %1334 = vmatmul.mubr.f32.gmra.mxu0 %v1122
      %v1335 = vpop.f32.mrf.mxu0
      %v1336 = vadd.f32 %v1152, %v1335
      %v1337 = vpop.f32.mrf.mxu0
      %1338 = vmatprep.mubr.f32.mxu0 0.0
      %1339 = vmatmul.mubr.f32.gmra.mxu0 %v1123
      %v1340 = vpop.f32.mrf.mxu0
      %v1341 = vadd.f32 %v1152, %v1340
      %v1342 = vpop.f32.mrf.mxu0
      %1343 = vmatprep.mubr.f32.mxu0 0.0
      %1344 = vmatmul.mubr.f32.gmra.mxu0 %v1124
      %v1345 = vpop.f32.mrf.mxu0
      %v1346 = vadd.f32 %v1152, %v1345
      %v1347 = vpop.f32.mrf.mxu0
      %1348 = vmatprep.mubr.f32.mxu0 0.0
      %1349 = vmatmul.mubr.f32.gmra.mxu0 %v1125
      %v1350 = vpop.f32.mrf.mxu0
      %v1351 = vadd.f32 %v1152, %v1350
      %v1352 = vpop.f32.mrf.mxu0
      %1353 = vmatprep.mubr.f32.mxu0 0.0
      %1354 = vmatmul.mubr.f32.gmra.mxu0 %v1126
      %v1355 = vpop.f32.mrf.mxu0
      %v1356 = vadd.f32 %v1152, %v1355
      %v1357 = vpop.f32.mrf.mxu0
      %1358 = vmatprep.mubr.f32.mxu0 0.0
      %1359 = vmatmul.mubr.f32.gmra.mxu0 %v1127
      %v1360 = vpop.f32.mrf.mxu0
      %v1361 = vadd.f32 %v1152, %v1360
      %v1362 = vpop.f32.mrf.mxu0
      %1363 = vmatprep.mubr.f32.mxu0 0.0
      %1364 = vmatmul.mubr.f32.gmra.mxu0 %v1128
      %v1365 = vpop.f32.mrf.mxu0
      %v1366 = vadd.f32 %v1152, %v1365
      %v1367 = vpop.f32.mrf.mxu0
      %1368 = vmatprep.mubr.f32.mxu0 0.0
      %1369 = vmatmul.mubr.f32.gmra.mxu0 %v1129
      %v1370 = vpop.f32.mrf.mxu0
      %v1371 = vadd.f32 %v1152, %v1370
      %v1372 = vpop.f32.mrf.mxu0
      %1373 = vmatprep.mubr.f32.mxu0 0.0
      %1374 = vmatmul.mubr.f32.gmra.mxu0 %v1130
      %v1375 = vpop.f32.mrf.mxu0
      %v1376 = vadd.f32 %v1152, %v1375
      %v1377 = vpop.f32.mrf.mxu0
      %1378 = vdwg.mxu0
      %v1379 = vmax.f32 %v1221, 0.0
      %v1380 = vmax.f32 %v1226, 0.0
      %v1381 = vmax.f32 %v1231, 0.0
      %v1382 = vmax.f32 %v1236, 0.0
      %v1383 = vmax.f32 %v1241, 0.0
      %v1384 = vmax.f32 %v1246, 0.0
      %v1385 = vmax.f32 %v1251, 0.0
      %v1386 = vmax.f32 %v1256, 0.0
      %v1387 = vmax.f32 %v1261, 0.0
      %v1388 = vmax.f32 %v1266, 0.0
      %v1389 = vmax.f32 %v1271, 0.0
      %v1390 = vmax.f32 %v1276, 0.0
      %v1391 = vmax.f32 %v1281, 0.0
      %v1392 = vmax.f32 %v1286, 0.0
      %v1393 = vmax.f32 %v1291, 0.0
      %v1394 = vmax.f32 %v1296, 0.0
      %v1395 = vmax.f32 %v1301, 0.0
      %v1396 = vmax.f32 %v1306, 0.0
      %v1397 = vmax.f32 %v1311, 0.0
      %v1398 = vmax.f32 %v1316, 0.0
      %v1399 = vmax.f32 %v1321, 0.0
      %v1400 = vmax.f32 %v1326, 0.0
      %v1401 = vmax.f32 %v1331, 0.0
      %v1402 = vmax.f32 %v1336, 0.0
      %v1403 = vmax.f32 %v1341, 0.0
      %v1404 = vmax.f32 %v1346, 0.0
      %v1405 = vmax.f32 %v1351, 0.0
      %v1406 = vmax.f32 %v1356, 0.0
      %v1407 = vmax.f32 %v1361, 0.0
      %v1408 = vmax.f32 %v1366, 0.0
      %v1409 = vmax.f32 %v1371, 0.0
      %v1410 = vmax.f32 %v1376, 0.0
      %1411 = vst [vmem:[%s280] sm:$0xff] %v1379
      %1412 = vst [vmem:[%s280 + $0x8] sm:$0xff] %v1380
      %1413 = vst [vmem:[%s280 + $0x10] sm:$0xff] %v1381
      %1414 = vst [vmem:[%s280 + $0x18] sm:$0xff] %v1382
      %1415 = vst [vmem:[%s280 + $0x20] sm:$0xff] %v1383
      %1416 = vst [vmem:[%s280 + $0x28] sm:$0xff] %v1384
      %1417 = vst [vmem:[%s280 + $0x30] sm:$0xff] %v1385
      %1418 = vst [vmem:[%s280 + $0x38] sm:$0xff] %v1386
      %1419 = vst [vmem:[%s280 + $0x40] sm:$0xff] %v1387
      %1420 = vst [vmem:[%s280 + $0x48] sm:$0xff] %v1388
      %1421 = vst [vmem:[%s280 + $0x50] sm:$0xff] %v1389
      %1422 = vst [vmem:[%s280 + $0x58] sm:$0xff] %v1390
      %1423 = vst [vmem:[%s280 + $0x60] sm:$0xff] %v1391
      %1424 = vst [vmem:[%s280 + $0x68] sm:$0xff] %v1392
      %1425 = vst [vmem:[%s280 + $0x70] sm:$0xff] %v1393
      %1426 = vst [vmem:[%s280 + $0x78] sm:$0xff] %v1394
      %1427 = vst [vmem:[%s280 + $0x80] sm:$0xff] %v1395
      %1428 = vst [vmem:[%s280 + $0x88] sm:$0xff] %v1396
      %1429 = vst [vmem:[%s280 + $0x90] sm:$0xff] %v1397
      %1430 = vst [vmem:[%s280 + $0x98] sm:$0xff] %v1398
      %1431 = vst [vmem:[%s280 + $0xa0] sm:$0xff] %v1399
      %1432 = vst [vmem:[%s280 + $0xa8] sm:$0xff] %v1400
      %1433 = vst [vmem:[%s280 + $0xb0] sm:$0xff] %v1401
      %1434 = vst [vmem:[%s280 + $0xb8] sm:$0xff] %v1402
      %1435 = vst [vmem:[%s280 + $0xc0] sm:$0xff] %v1403
      %1436 = vst [vmem:[%s280 + $0xc8] sm:$0xff] %v1404
      %1437 = vst [vmem:[%s280 + $0xd0] sm:$0xff] %v1405
      %1438 = vst [vmem:[%s280 + $0xd8] sm:$0xff] %v1406
      %1439 = vst [vmem:[%s280 + $0xe0] sm:$0xff] %v1407
      %1440 = vst [vmem:[%s280 + $0xe8] sm:$0xff] %v1408
      %1441 = vst [vmem:[%s280 + $0xf0] sm:$0xff] %v1409
      %1442 = vst [vmem:[%s280 + $0xf8] sm:$0xff] %v1410
      %s1443 = smul.u32 32, %s18
      %p1444 = scmp.lt.s32.totalorder %s1443, 63
      %s1445 = scalar_select %p1444, %s1443, 63
      %s1446 = smul.addr %s1445, 8
      %s1447 = scalar_lea.vmem %s7, %s1446
      // Predicated region
      $region49: #{gcn_n_layer_forward.1} parent=47 // pred_check
        %p1448 = pneg %p188
      $region50: #{gcn_n_layer_forward.1} parent=47 // pred_check_branch
        %1450 = sbr.rel (%p1448) target = $region52
      $region51: #{gcn_n_layer_forward.1} parent=47 // pred_region
        %s1451 = smul.u32 32, %s18
      $region52: #{gcn_n_layer_forward.1} parent=47 // pred_fallthru
        _
    $region48: #{gcn_n_layer_forward.1} parent=5 // pred_fallthru
      _
    %p1452 = scmp.le.s32.totalorder 2, %s13
    // Predicated region
    $region53: #{gcn_n_layer_forward.1} parent=5 // pred_check
      %p1453 = pneg %p1452
    $region54: #{gcn_n_layer_forward.1} parent=5 // pred_check_branch
      %1455 = sbr.rel (%p1453) target = $region56
    $region55: #{gcn_n_layer_forward.1} parent=5 // pred_region
      %s1456 = ssub.s32 %s13, 2
      // Predicated region
      $region57: #{gcn_n_layer_forward.1} parent=55 // pred_check
        %p1457 = pneg %p194
      $region58: #{gcn_n_layer_forward.1} parent=55 // pred_check_branch
        %1459 = sbr.rel (%p1457) target = $region60
      $region59: #{gcn_n_layer_forward.1} parent=55 // pred_region
        %s1460 = smul.u32 32, %s19
        %p1461 = scmp.lt.s32.totalorder %s1460, 63
        %s1462 = scalar_select %p1461, %s1460, 63
        %s1463 = smul.addr %s1462, 8
        %s1464 = scalar_lea.vmem %s7, %s1463
      $region60: #{gcn_n_layer_forward.1} parent=55 // pred_fallthru
        _
    $region56: #{gcn_n_layer_forward.1} parent=5 // pred_fallthru
      _
  $region6: #{gcn_n_layer_forward.1} parent=0 // loop_footer
    %s17 = sadd.s32 1, %s13
  $region7: #{gcn_n_layer_forward.1} parent=0 // loop_footer_branch
    %12 = sbr.rel target = $region3
  $region8: #{gcn_n_layer_forward.1} parent=0 // loop_exit
    _

</llo_original>
